<compile_context>
chip_gen: v7x
topology: tpu7x:2x2x1
jax: 0.10.0
libtpu: 0.0.40
codegen_flags: <defaults>
</compile_context>

<pallas_src>
import math
from functools import partial

import numpy as np
import jax
import jax.numpy as jnp
from jax.experimental import pallas as pl
from jax.experimental.pallas import tpu as pltpu


# ---------------------------------------------------------------------------
# Fused forward kernel: one grid step per batch element.
# ---------------------------------------------------------------------------
def _fused_forward_kernel(xapp_ref, xtime_ref, tvec_ref, tgt_ref,
                          emb_ref, tw_ref, tb_ref,
                          s1w_ref, s1b_ref, ff1_ref, ff2_ref, avg_ref,
                          lng_ref, lnb_ref, pwx_ref, pwt_ref, pb_ref,
                          score_ref, nll_ref,
                          flatbuf, rowbuf,
                          *, n_layers, L, D, V, act):
    # ---- encode_input: app embedding (one-hot matmul on MXU) + Linear(1, D) ----
    ids = xapp_ref[0]                                                   # (L, 1) int32
    onehot = (ids == jax.lax.broadcasted_iota(jnp.int32, (L, V), 1)
              ).astype(jnp.float32)                                     # (L, V)
    t = xtime_ref[0]                                                    # (L, 1)
    x = (jnp.dot(onehot, emb_ref[...], preferred_element_type=jnp.float32)
         + t * tw_ref[...] + tb_ref[...])                               # (L, D)

    for li in range(n_layers):
        # flatten (L, D) -> (1, L*D) row-major through a VMEM scratch ref
        # (ref slicing = plain memory addressing, no vreg relayout gymnastics)
        for l in range(L):
            flatbuf[:, l * D:(l + 1) * D] = x[l:l + 1, :]
        xf = flatbuf[...]                                               # (1, L*D)

        # fused [x + AutoCorrelationLayer(FourierBlock)(x)] followed by
        # series_decomp #1, precomputed as one (L*D, L*D) operator + bias.
        x1f = (jnp.dot(xf, s1w_ref[li], preferred_element_type=jnp.float32)
               + s1b_ref[li])                                           # (1, L*D)

        # unflatten (1, L*D) -> (L, D)
        flatbuf[...] = x1f
        for l in range(L):
            rowbuf[l:l + 1, :] = flatbuf[:, l * D:(l + 1) * D]
        x = rowbuf[...]                                                 # (L, D)

        # FFN (Conv1d kernel_size=1, bias-free): d_ff intermediate stays in VMEM
        y = jnp.dot(x, ff1_ref[li], preferred_element_type=jnp.float32)
        if act == "relu":
            y = jnp.maximum(y, 0.0)
        else:  # exact (erf) gelu, matching F.gelu default
            y = 0.5 * y * (1.0 + jax.lax.erf(y * (1.0 / math.sqrt(2.0))))
        y = jnp.dot(y, ff2_ref[li], preferred_element_type=jnp.float32)

        # residual + series_decomp #2 (moving_avg as an (L, L) matmul)
        z = x + y
        x = z - jnp.dot(avg_ref[...], z, preferred_element_type=jnp.float32)

    # ---- my_Layernorm: LayerNorm over channels, then subtract the seq-mean ----
    mu = jnp.mean(x, axis=-1, keepdims=True)
    var = jnp.mean(jnp.square(x - mu), axis=-1, keepdims=True)
    xhat = (x - mu) * jax.lax.rsqrt(var + 1e-5) * lng_ref[...] + lnb_ref[...]
    enc = xhat - jnp.mean(xhat, axis=0, keepdims=True)                  # (L, D)

    # ---- projection on [last_token ; time_vecs[:, -1, :]] ----
    # (the concatenation is folded into a split matmul: no lane concat needed)
    last = enc[L - 1:L, :]                                              # (1, D)
    tv_last = tvec_ref[0][L - 1:L, :]                                   # (1, 24)
    score = (jnp.dot(last, pwx_ref[...], preferred_element_type=jnp.float32)
             + jnp.dot(tv_last, pwt_ref[...], preferred_element_type=jnp.float32)
             + pb_ref[...])                                             # (1, C)
    score_ref[0] = score

    # ---- per-sample cross entropy (mean over batch done in the wrapper) ----
    m = jnp.max(score, axis=-1, keepdims=True)
    lse = jnp.log(jnp.sum(jnp.exp(score - m), axis=-1, keepdims=True)) + m
    col = jax.lax.broadcasted_iota(jnp.int32, score.shape, 1)
    tgt = tgt_ref[0]                                                    # (1, 1) int32
    picked = jnp.sum(jnp.where(col == tgt, score, 0.0), axis=-1, keepdims=True)
    nll_ref[0] = lse - picked


# ---------------------------------------------------------------------------
# Input-independent constants (DFT matrices, moving-average matrix, permutations)
# ---------------------------------------------------------------------------
def build_consts(cfg, modes=32, mode_select="random"):
    L = cfg["seq_len"]; D = cfg["d_model"]; H = cfg["n_heads"]; E = D // H
    half = L // 2
    m_eff = min(modes, half)
    if mode_select == "random":
        rng = np.random.default_rng(0)              # deterministic mode selection
        idx = np.sort(rng.permutation(half)[:m_eff])
    else:
        idx = np.arange(m_eff)
    M = len(idx)

    # real rfft evaluated at the selected input modes
    l_in = np.arange(L)[:, None]
    km = idx[None, :].astype(np.float64)
    ang = 2.0 * np.pi * km * l_in / L
    cosT = np.cos(ang)                              # (L, M)  Re part
    sinT = -np.sin(ang)                             # (L, M)  Im part

    # irfft of a sparse spectrum populated only at output bins 0..M-1
    mo = np.arange(M)[:, None].astype(np.float64)
    lo = np.arange(L)[None, :]
    ang_o = 2.0 * np.pi * mo * lo / L
    dc_nyq = (mo == 0) | ((L % 2 == 0) & (mo == L // 2))
    wgt = np.where(dc_nyq, 1.0, 2.0)
    icr = wgt * np.cos(ang_o) / L                   # (M, L)
    ici = np.where(dc_nyq, 0.0, -wgt * np.sin(ang_o) / L)   # Im of DC/Nyquist dropped

    # moving_avg(kernel=25, stride=1, edge replication) as an (L, L) matrix
    ksz, pad = 25, 12
    A = np.zeros((L, L))
    for t in range(L):
        for p in range(t, t + ksz):
            s = min(max(p - pad, 0), L - 1)
            A[t, s] += 1.0 / ksz

    # permutation: token-major (L, H, E) flat  ->  contiguous (H, E, L) flat
    LD = L * D
    P1 = np.zeros((LD, LD))
    for ll in range(L):
        for h in range(H):
            for e in range(E):
                P1[ll * D + h * E + e, h * E * L + e * L + ll] = 1.0

    # moving average as a right-multiplication on row-major flattened (L*D) rows
    R = np.kron(A.T, np.eye(D))

    return dict(cosT=jnp.asarray(cosT, jnp.float32),
                sinT=jnp.asarray(sinT, jnp.float32),
                icr=jnp.asarray(icr, jnp.float32),
                ici=jnp.asarray(ici, jnp.float32),
                avg=jnp.asarray(A, jnp.float32),
                P1=jnp.asarray(P1, jnp.float32),
                R=jnp.asarray(R, jnp.float32),
                M=M)


# ---------------------------------------------------------------------------
# Parameters (same init scheme / semantics as the PyTorch module)
# ---------------------------------------------------------------------------
def init_params(key, cfg, M):
    D = cfg["d_model"]; H = cfg["n_heads"]; E = D // H
    dff = cfg["d_ff"]; V = cfg["app_vocab_size"]; C = cfg["num_app"]

    def lin(k, fan_in, fan_out):
        k1, k2 = jax.random.split(k)
        lim = 1.0 / math.sqrt(fan_in)
        w = jax.random.uniform(k1, (fan_in, fan_out), jnp.float32, -lim, lim)
        b = jax.random.uniform(k2, (1, fan_out), jnp.float32, -lim, lim)
        return w, b

    keys = jax.random.split(key, 3 + cfg["e_layers"])
    params = {}
    params["app_emb"] = jax.random.normal(keys[0], (V, D), jnp.float32)
    params["time_w"], params["time_b"] = lin(keys[1], 1, D)
    params["proj_w"], params["proj_b"] = lin(keys[2], D + 24, C)
    params["ln_g"] = jnp.ones((1, D), jnp.float32)
    params["ln_b"] = jnp.zeros((1, D), jnp.float32)

    scale = 1.0 / (D * D)
    layers = []
    for li in range(cfg["e_layers"]):
        ks = jax.random.split(keys[3 + li], 6)
        wq, bq = lin(ks[0], D, D)
        wo, bo = lin(ks[1], D, D)
        w_ff1, _ = lin(ks[2], D, dff)     # Conv1d(D, d_ff, 1, bias=False)
        w_ff2, _ = lin(ks[3], dff, D)     # Conv1d(d_ff, D, 1, bias=False)
        four_wr = scale * jax.random.uniform(ks[4], (H, E, E, M), jnp.float32)
        four_wi = scale * jax.random.uniform(ks[5], (H, E, E, M), jnp.float32)
        layers.append(dict(wq=wq, bq=bq, wo=wo, bo=bo,
                           w_ff1=w_ff1, w_ff2=w_ff2,
                           four_wr=four_wr, four_wi=four_wi))
    params["layers"] = layers
    return params


# ---------------------------------------------------------------------------
# Fold all input-independent linear pieces per layer into one operator.
# ---------------------------------------------------------------------------
def prepare_fused_params(params, consts, cfg):
    """stage1:  x_flat @ S1W + S1b  ==  series_decomp1( x + OutProj(Fourier(QProj(x))) )
    where x_flat is the row-major flattened (L, D) activation of one batch element."""
    L = cfg["seq_len"]; D = cfg["d_model"]; H = cfg["n_heads"]; E = D // H
    LD = L * D
    I = jnp.eye(LD, dtype=jnp.float32)
    eyeL = jnp.eye(L, dtype=jnp.float32)
    ImR = I - consts["R"]                                   # series_decomp residual
    cosT, sinT = consts["cosT"], consts["sinT"]
    icr, ici = consts["icr"], consts["ici"]

    s1w, s1b, ff1, ff2 = [], [], [], []
    for lp in params["layers"]:
        wr, wi = lp["four_wr"], lp["four_wi"]               # (H, E, E, M)
        # per-head (E*L, E*L) operator: rfft@modes -> complex channel mix -> irfft
        hop = (jnp.einsum("lm,hiom,mt->hilot", cosT, wr, icr)
               + jnp.einsum("lm,hiom,mt->hilot", cosT, wi, ici)
               + jnp.einsum("lm,hiom,mt->hilot", sinT, wr, ici)
               - jnp.einsum("lm,hiom,mt->hilot", sinT, wi, icr))
        hop = hop.reshape(H, E * L, E * L)
        blk = jnp.zeros((LD, LD), jnp.float32)              # block-diagonal over heads
        EL = E * L
        for h in range(H):
            blk = blk.at[h * EL:(h + 1) * EL, h * EL:(h + 1) * EL].set(hop[h])

        wq_k = jnp.kron(eyeL, lp["wq"])                     # per-token q projection
        wo_k = jnp.kron(eyeL, lp["wo"])                     # per-token out projection
        # P1 = head-split permute; the torch `out.view(B, L, -1)` quirk is the
        # identity on the flat vector (pure reinterpretation), so wo_k follows blk.
        tail = consts["P1"] @ blk @ wo_k
        attn_op = wq_k @ tail
        attn_b = jnp.tile(lp["bq"], (1, L)) @ tail + jnp.tile(lp["bo"], (1, L))

        s1w.append((I + attn_op) @ ImR)                     # + residual, + decomp1
        s1b.append(attn_b @ ImR)
        ff1.append(lp["w_ff1"])
        ff2.append(lp["w_ff2"])

    return dict(
        emb=params["app_emb"], tw=params["time_w"], tb=params["time_b"],
        s1w=jnp.stack(s1w), s1b=jnp.stack(s1b),
        ff1=jnp.stack(ff1), ff2=jnp.stack(ff2),
        avg=consts["avg"],
        lng=params["ln_g"], lnb=params["ln_b"],
        pw_x=params["proj_w"][:D], pw_t=params["proj_w"][D:],
        pb=params["proj_b"])


# ---------------------------------------------------------------------------
# Forward pass: a single pallas_call
# ---------------------------------------------------------------------------
def fedformer_forward(fused, cfg, x_app, x_time, time_vecs, targets, mode):
    B, L = x_app.shape
    D = cfg["d_model"]; V = cfg["app_vocab_size"]; C = cfg["num_app"]
    nl = fused["s1w"].shape[0]; dff = fused["ff1"].shape[2]; LD = L * D
    Tfeat = time_vecs.shape[-1]

    kernel = partial(_fused_forward_kernel, n_layers=nl, L=L, D=D, V=V,
                     act=cfg["activation"])

    score, nll = pl.pallas_call(
        kernel,
        grid=(B,),
        in_specs=[
            pl.BlockSpec((1, L, 1), lambda b: (b, 0, 0)),        # x_app (int ids)
            pl.BlockSpec((1, L, 1), lambda b: (b, 0, 0)),        # x_time
            pl.BlockSpec((1, L, Tfeat), lambda b: (b, 0, 0)),    # time_vecs
            pl.BlockSpec((1, 1, 1), lambda b: (b, 0, 0)),        # targets
            pl.BlockSpec((V, D), lambda b: (0, 0)),              # app embedding
            pl.BlockSpec((1, D), lambda b: (0, 0)),              # time linear W
            pl.BlockSpec((1, D), lambda b: (0, 0)),              # time linear b
            pl.BlockSpec((nl, LD, LD), lambda b: (0, 0, 0)),     # fused stage-1 op
            pl.BlockSpec((nl, 1, LD), lambda b: (0, 0, 0)),      # fused stage-1 bias
            pl.BlockSpec((nl, D, dff), lambda b: (0, 0, 0)),     # FFN conv1
            pl.BlockSpec((nl, dff, D), lambda b: (0, 0, 0)),     # FFN conv2
            pl.BlockSpec((L, L), lambda b: (0, 0)),              # moving-average matrix
            pl.BlockSpec((1, D), lambda b: (0, 0)),              # layernorm gamma
            pl.BlockSpec((1, D), lambda b: (0, 0)),              # layernorm beta
            pl.BlockSpec((D, C), lambda b: (0, 0)),              # projection (enc part)
            pl.BlockSpec((Tfeat, C), lambda b: (0, 0)),          # projection (time part)
            pl.BlockSpec((1, C), lambda b: (0, 0)),              # projection bias
        ],
        out_specs=(
            pl.BlockSpec((1, 1, C), lambda b: (b, 0, 0)),        # score
            pl.BlockSpec((1, 1, 1), lambda b: (b, 0, 0)),        # per-sample CE
        ),
        out_shape=(jax.ShapeDtypeStruct((B, 1, C), jnp.float32),
                   jax.ShapeDtypeStruct((B, 1, 1), jnp.float32)),
        scratch_shapes=[pltpu.VMEM((1, LD), jnp.float32),        # flatten buffer
                        pltpu.VMEM((L, D), jnp.float32)],        # unflatten buffer
        compiler_params=pltpu.CompilerParams(
            dimension_semantics=("parallel",)),
    )(x_app.astype(jnp.int32).reshape(B, L, 1),
      x_time.astype(jnp.float32).reshape(B, L, 1),
      time_vecs.astype(jnp.float32),
      targets.astype(jnp.int32).reshape(B, 1, 1),
      fused["emb"], fused["tw"], fused["tb"],
      fused["s1w"], fused["s1b"], fused["ff1"], fused["ff2"],
      fused["avg"], fused["lng"], fused["lnb"],
      fused["pw_x"], fused["pw_t"], fused["pb"])

    if mode == "predict":
        return score.reshape(B, C)
    return jnp.mean(nll)


# ---------------------------------------------------------------------------
# Main
# ---------------------------------------------------------------------------
if __name__ == "__main__":
    cfg = dict(seq_len=8, d_model=32, n_heads=8, d_ff=64, e_layers=2,
               dropout=0.1, activation="relu", app_vocab_size=50, num_app=50)

    consts = build_consts(cfg, modes=32, mode_select="random")
    key = jax.random.PRNGKey(0)
    kp, k1, k2, k3, k4 = jax.random.split(key, 5)
    params = init_params(kp, cfg, consts["M"])
    fused = prepare_fused_params(params, consts, cfg)

    B, L = 2, cfg["seq_len"]
    x_app = jax.random.randint(k1, (B, L), 0, cfg["app_vocab_size"], jnp.int32)
    x_time = jax.random.uniform(k2, (B, L), jnp.float32)
    time_vecs = jax.random.uniform(k3, (B, L, 24), jnp.float32)
    targets = jax.random.randint(k4, (B,), 0, cfg["num_app"], jnp.int32)

    score = fedformer_forward(fused, cfg, x_app, x_time, time_vecs, targets, "predict")
    loss = fedformer_forward(fused, cfg, x_app, x_time, time_vecs, targets, "train")
    jax.block_until_ready(score)
    jax.block_until_ready(loss)
    assert score.shape == (B, cfg["num_app"])
    assert loss.shape == ()
    print("KERNEL_OK")
</pallas_src>

<mosaic_0001>
module attributes {stable_mosaic.version = 11 : i64} {
  func.func @_fused_forward_kernel(%arg0: i32, %arg1: memref<1x8x1xi32, #tpu.memory_space<vmem>>, %arg2: memref<1x8x1xf32, #tpu.memory_space<vmem>>, %arg3: memref<1x8x24xf32, #tpu.memory_space<vmem>>, %arg4: memref<1x1x1xi32, #tpu.memory_space<vmem>>, %arg5: memref<50x32xf32, #tpu.memory_space<vmem>>, %arg6: memref<1x32xf32, #tpu.memory_space<vmem>>, %arg7: memref<1x32xf32, #tpu.memory_space<vmem>>, %arg8: memref<2x256x256xf32, #tpu.memory_space<vmem>>, %arg9: memref<2x1x256xf32, #tpu.memory_space<vmem>>, %arg10: memref<2x32x64xf32, #tpu.memory_space<vmem>>, %arg11: memref<2x64x32xf32, #tpu.memory_space<vmem>>, %arg12: memref<8x8xf32, #tpu.memory_space<vmem>>, %arg13: memref<1x32xf32, #tpu.memory_space<vmem>>, %arg14: memref<1x32xf32, #tpu.memory_space<vmem>>, %arg15: memref<32x50xf32, #tpu.memory_space<vmem>>, %arg16: memref<24x50xf32, #tpu.memory_space<vmem>>, %arg17: memref<1x50xf32, #tpu.memory_space<vmem>>, %arg18: memref<1x1x50xf32, #tpu.memory_space<vmem>>, %arg19: memref<1x1x1xf32, #tpu.memory_space<vmem>>, %arg20: memref<1x256xf32, #tpu.memory_space<vmem>>, %arg21: memref<8x32xf32, #tpu.memory_space<vmem>>) attributes {dimension_semantics = [#tpu.dimension_semantics<parallel>], iteration_bounds = array<i64: 2>, scalar_prefetch = 0 : i64, scratch_operands = 2 : i64, tpu.core_type = #tpu.core_type<tc>, window_params = [{transform_indices = @transform_0, window_bounds = array<i64: 1, 8, 1>}, {transform_indices = @transform_1, window_bounds = array<i64: 1, 8, 1>}, {transform_indices = @transform_2, window_bounds = array<i64: 1, 8, 24>}, {transform_indices = @transform_3, window_bounds = array<i64: 1, 1, 1>}, {pipeline_mode = #tpu.pipeline_mode<synchronous>, transform_indices = @transform_4, window_bounds = array<i64: 50, 32>}, {pipeline_mode = #tpu.pipeline_mode<synchronous>, transform_indices = @transform_5, window_bounds = array<i64: 1, 32>}, {pipeline_mode = #tpu.pipeline_mode<synchronous>, transform_indices = @transform_6, window_bounds = array<i64: 1, 32>}, {pipeline_mode = #tpu.pipeline_mode<synchronous>, transform_indices = @transform_7, window_bounds = array<i64: 2, 256, 256>}, {pipeline_mode = #tpu.pipeline_mode<synchronous>, transform_indices = @transform_8, window_bounds = array<i64: 2, 1, 256>}, {pipeline_mode = #tpu.pipeline_mode<synchronous>, transform_indices = @transform_9, window_bounds = array<i64: 2, 32, 64>}, {pipeline_mode = #tpu.pipeline_mode<synchronous>, transform_indices = @transform_10, window_bounds = array<i64: 2, 64, 32>}, {pipeline_mode = #tpu.pipeline_mode<synchronous>, transform_indices = @transform_11, window_bounds = array<i64: 8, 8>}, {pipeline_mode = #tpu.pipeline_mode<synchronous>, transform_indices = @transform_12, window_bounds = array<i64: 1, 32>}, {pipeline_mode = #tpu.pipeline_mode<synchronous>, transform_indices = @transform_13, window_bounds = array<i64: 1, 32>}, {pipeline_mode = #tpu.pipeline_mode<synchronous>, transform_indices = @transform_14, window_bounds = array<i64: 32, 50>}, {pipeline_mode = #tpu.pipeline_mode<synchronous>, transform_indices = @transform_15, window_bounds = array<i64: 24, 50>}, {pipeline_mode = #tpu.pipeline_mode<synchronous>, transform_indices = @transform_16, window_bounds = array<i64: 1, 50>}, {transform_indices = @transform_17, window_bounds = array<i64: 1, 1, 50>}, {transform_indices = @transform_18, window_bounds = array<i64: 1, 1, 1>}]} {
    %c0 = arith.constant 0 : index
    %c0_0 = arith.constant 0 : index
    %c0_1 = arith.constant 0 : index
    %0 = vector.load %arg1[%c0, %c0_0, %c0_1] : memref<1x8x1xi32, #tpu.memory_space<vmem>>, vector<1x8x1xi32>
    %1 = vector.shape_cast %0 : vector<1x8x1xi32> to vector<8x1xi32>
    %2 = tpu.iota {dimensions = array<i32: 1>} : vector<8x50xi32>
    %3 = vector.broadcast %1 : vector<8x1xi32> to vector<8x50xi32>
    %4 = arith.cmpi eq, %3, %2 : vector<8x50xi32>
    %5 = arith.extui %4 : vector<8x50xi1> to vector<8x50xi32>
    %6 = arith.sitofp %5 : vector<8x50xi32> to vector<8x50xf32>
    %c0_2 = arith.constant 0 : index
    %c0_3 = arith.constant 0 : index
    %c0_4 = arith.constant 0 : index
    %7 = vector.load %arg2[%c0_2, %c0_3, %c0_4] : memref<1x8x1xf32, #tpu.memory_space<vmem>>, vector<1x8x1xf32>
    %8 = vector.shape_cast %7 : vector<1x8x1xf32> to vector<8x1xf32>
    %c0_5 = arith.constant 0 : index
    %c0_6 = arith.constant 0 : index
    %9 = vector.load %arg5[%c0_5, %c0_6] : memref<50x32xf32, #tpu.memory_space<vmem>>, vector<50x32xf32>
    %cst = arith.constant dense<0.000000e+00> : vector<8x32xf32>
    %10 = tpu.matmul %6, %9, %cst {dimension_numbers = #tpu.dot_dimension_numbers<[1], [0], [0], [1], [0, 0, 1, 1], [], []>} : vector<8x50xf32>, vector<50x32xf32>, vector<8x32xf32> -> vector<8x32xf32>
    %c0_7 = arith.constant 0 : index
    %c0_8 = arith.constant 0 : index
    %11 = vector.load %arg6[%c0_7, %c0_8] : memref<1x32xf32, #tpu.memory_space<vmem>>, vector<1x32xf32>
    %12 = vector.broadcast %8 : vector<8x1xf32> to vector<8x32xf32>
    %13 = vector.broadcast %11 : vector<1x32xf32> to vector<8x32xf32>
    %14 = arith.mulf %12, %13 : vector<8x32xf32>
    %15 = arith.addf %10, %14 : vector<8x32xf32>
    %c0_9 = arith.constant 0 : index
    %c0_10 = arith.constant 0 : index
    %16 = vector.load %arg7[%c0_9, %c0_10] : memref<1x32xf32, #tpu.memory_space<vmem>>, vector<1x32xf32>
    %17 = vector.broadcast %16 : vector<1x32xf32> to vector<8x32xf32>
    %18 = arith.addf %15, %17 : vector<8x32xf32>
    %19 = vector.extract_strided_slice %18 {offsets = [0, 0], sizes = [1, 32], strides = [1, 1]} : vector<8x32xf32> to vector<1x32xf32>
    %c0_11 = arith.constant 0 : index
    %c0_12 = arith.constant 0 : index
    %20 = vector.load %arg20[%c0_11, %c0_12] : memref<1x256xf32, #tpu.memory_space<vmem>>, vector<1x32xf32>
    tpu.vector_store %arg20[%c0_11, %c0_12], %19 {strides = array<i32>} : memref<1x256xf32, #tpu.memory_space<vmem>>, vector<1x32xf32>,
    %21 = vector.extract_strided_slice %18 {offsets = [1, 0], sizes = [1, 32], strides = [1, 1]} : vector<8x32xf32> to vector<1x32xf32>
    %c0_13 = arith.constant 0 : index
    %c32 = arith.constant 32 : index
    %22 = vector.load %arg20[%c0_13, %c32] : memref<1x256xf32, #tpu.memory_space<vmem>>, vector<1x32xf32>
    tpu.vector_store %arg20[%c0_13, %c32], %21 {strides = array<i32>} : memref<1x256xf32, #tpu.memory_space<vmem>>, vector<1x32xf32>,
    %23 = vector.extract_strided_slice %18 {offsets = [2, 0], sizes = [1, 32], strides = [1, 1]} : vector<8x32xf32> to vector<1x32xf32>
    %c0_14 = arith.constant 0 : index
    %c64 = arith.constant 64 : index
    %24 = vector.load %arg20[%c0_14, %c64] : memref<1x256xf32, #tpu.memory_space<vmem>>, vector<1x32xf32>
    tpu.vector_store %arg20[%c0_14, %c64], %23 {strides = array<i32>} : memref<1x256xf32, #tpu.memory_space<vmem>>, vector<1x32xf32>,
    %25 = vector.extract_strided_slice %18 {offsets = [3, 0], sizes = [1, 32], strides = [1, 1]} : vector<8x32xf32> to vector<1x32xf32>
    %c0_15 = arith.constant 0 : index
    %c96 = arith.constant 96 : index
    %26 = vector.load %arg20[%c0_15, %c96] : memref<1x256xf32, #tpu.memory_space<vmem>>, vector<1x32xf32>
    tpu.vector_store %arg20[%c0_15, %c96], %25 {strides = array<i32>} : memref<1x256xf32, #tpu.memory_space<vmem>>, vector<1x32xf32>,
    %27 = vector.extract_strided_slice %18 {offsets = [4, 0], sizes = [1, 32], strides = [1, 1]} : vector<8x32xf32> to vector<1x32xf32>
    %c0_16 = arith.constant 0 : index
    %c128 = arith.constant 128 : index
    %28 = vector.load %arg20[%c0_16, %c128] : memref<1x256xf32, #tpu.memory_space<vmem>>, vector<1x32xf32>
    tpu.vector_store %arg20[%c0_16, %c128], %27 {strides = array<i32>} : memref<1x256xf32, #tpu.memory_space<vmem>>, vector<1x32xf32>,
    %29 = vector.extract_strided_slice %18 {offsets = [5, 0], sizes = [1, 32], strides = [1, 1]} : vector<8x32xf32> to vector<1x32xf32>
    %c0_17 = arith.constant 0 : index
    %c160 = arith.constant 160 : index
    %30 = vector.load %arg20[%c0_17, %c160] : memref<1x256xf32, #tpu.memory_space<vmem>>, vector<1x32xf32>
    tpu.vector_store %arg20[%c0_17, %c160], %29 {strides = array<i32>} : memref<1x256xf32, #tpu.memory_space<vmem>>, vector<1x32xf32>,
    %31 = vector.extract_strided_slice %18 {offsets = [6, 0], sizes = [1, 32], strides = [1, 1]} : vector<8x32xf32> to vector<1x32xf32>
    %c0_18 = arith.constant 0 : index
    %c192 = arith.constant 192 : index
    %32 = vector.load %arg20[%c0_18, %c192] : memref<1x256xf32, #tpu.memory_space<vmem>>, vector<1x32xf32>
    tpu.vector_store %arg20[%c0_18, %c192], %31 {strides = array<i32>} : memref<1x256xf32, #tpu.memory_space<vmem>>, vector<1x32xf32>,
    %33 = vector.extract_strided_slice %18 {offsets = [7, 0], sizes = [1, 32], strides = [1, 1]} : vector<8x32xf32> to vector<1x32xf32>
    %c0_19 = arith.constant 0 : index
    %c224 = arith.constant 224 : index
    %34 = vector.load %arg20[%c0_19, %c224] : memref<1x256xf32, #tpu.memory_space<vmem>>, vector<1x32xf32>
    tpu.vector_store %arg20[%c0_19, %c224], %33 {strides = array<i32>} : memref<1x256xf32, #tpu.memory_space<vmem>>, vector<1x32xf32>,
    %c0_20 = arith.constant 0 : index
    %c0_21 = arith.constant 0 : index
    %35 = vector.load %arg20[%c0_20, %c0_21] : memref<1x256xf32, #tpu.memory_space<vmem>>, vector<1x256xf32>
    %c0_22 = arith.constant 0 : index
    %c0_23 = arith.constant 0 : index
    %c0_24 = arith.constant 0 : index
    %36 = vector.load %arg8[%c0_22, %c0_23, %c0_24] : memref<2x256x256xf32, #tpu.memory_space<vmem>>, vector<1x256x256xf32>
    %37 = vector.shape_cast %36 : vector<1x256x256xf32> to vector<256x256xf32>
    %cst_25 = arith.constant dense<0.000000e+00> : vector<1x256xf32>
    %38 = tpu.matmul %35, %37, %cst_25 {dimension_numbers = #tpu.dot_dimension_numbers<[1], [0], [0], [1], [0, 0, 1, 1], [], []>} : vector<1x256xf32>, vector<256x256xf32>, vector<1x256xf32> -> vector<1x256xf32>
    %c0_26 = arith.constant 0 : index
    %c0_27 = arith.constant 0 : index
    %c0_28 = arith.constant 0 : index
    %39 = vector.load %arg9[%c0_26, %c0_27, %c0_28] : memref<2x1x256xf32, #tpu.memory_space<vmem>>, vector<1x1x256xf32>
    %40 = vector.shape_cast %39 : vector<1x1x256xf32> to vector<1x256xf32>
    %41 = arith.addf %38, %40 : vector<1x256xf32>
    %c0_29 = arith.constant 0 : index
    %c0_30 = arith.constant 0 : index
    %42 = vector.load %arg20[%c0_29, %c0_30] : memref<1x256xf32, #tpu.memory_space<vmem>>, vector<1x256xf32>
    tpu.vector_store %arg20[%c0_29, %c0_30], %41 {strides = array<i32>} : memref<1x256xf32, #tpu.memory_space<vmem>>, vector<1x256xf32>,
    %c0_31 = arith.constant 0 : index
    %c0_32 = arith.constant 0 : index
    %43 = vector.load %arg20[%c0_31, %c0_32] : memref<1x256xf32, #tpu.memory_space<vmem>>, vector<1x32xf32>
    %c0_33 = arith.constant 0 : index
    %c0_34 = arith.constant 0 : index
    %44 = vector.load %arg21[%c0_33, %c0_34] : memref<8x32xf32, #tpu.memory_space<vmem>>, vector<1x32xf32>
    tpu.vector_store %arg21[%c0_33, %c0_34], %43 {strides = array<i32>} : memref<8x32xf32, #tpu.memory_space<vmem>>, vector<1x32xf32>,
    %c0_35 = arith.constant 0 : index
    %c32_36 = arith.constant 32 : index
    %45 = vector.load %arg20[%c0_35, %c32_36] : memref<1x256xf32, #tpu.memory_space<vmem>>, vector<1x32xf32>
    %c1 = arith.constant 1 : index
    %c0_37 = arith.constant 0 : index
    %46 = vector.load %arg21[%c1, %c0_37] : memref<8x32xf32, #tpu.memory_space<vmem>>, vector<1x32xf32>
    tpu.vector_store %arg21[%c1, %c0_37], %45 {strides = array<i32>} : memref<8x32xf32, #tpu.memory_space<vmem>>, vector<1x32xf32>,
    %c0_38 = arith.constant 0 : index
    %c64_39 = arith.constant 64 : index
    %47 = vector.load %arg20[%c0_38, %c64_39] : memref<1x256xf32, #tpu.memory_space<vmem>>, vector<1x32xf32>
    %c2 = arith.constant 2 : index
    %c0_40 = arith.constant 0 : index
    %48 = vector.load %arg21[%c2, %c0_40] : memref<8x32xf32, #tpu.memory_space<vmem>>, vector<1x32xf32>
    tpu.vector_store %arg21[%c2, %c0_40], %47 {strides = array<i32>} : memref<8x32xf32, #tpu.memory_space<vmem>>, vector<1x32xf32>,
    %c0_41 = arith.constant 0 : index
    %c96_42 = arith.constant 96 : index
    %49 = vector.load %arg20[%c0_41, %c96_42] : memref<1x256xf32, #tpu.memory_space<vmem>>, vector<1x32xf32>
    %c3 = arith.constant 3 : index
    %c0_43 = arith.constant 0 : index
    %50 = vector.load %arg21[%c3, %c0_43] : memref<8x32xf32, #tpu.memory_space<vmem>>, vector<1x32xf32>
    tpu.vector_store %arg21[%c3, %c0_43], %49 {strides = array<i32>} : memref<8x32xf32, #tpu.memory_space<vmem>>, vector<1x32xf32>,
    %c0_44 = arith.constant 0 : index
    %c128_45 = arith.constant 128 : index
    %51 = vector.load %arg20[%c0_44, %c128_45] : memref<1x256xf32, #tpu.memory_space<vmem>>, vector<1x32xf32>
    %c4 = arith.constant 4 : index
    %c0_46 = arith.constant 0 : index
    %52 = vector.load %arg21[%c4, %c0_46] : memref<8x32xf32, #tpu.memory_space<vmem>>, vector<1x32xf32>
    tpu.vector_store %arg21[%c4, %c0_46], %51 {strides = array<i32>} : memref<8x32xf32, #tpu.memory_space<vmem>>, vector<1x32xf32>,
    %c0_47 = arith.constant 0 : index
    %c160_48 = arith.constant 160 : index
    %53 = vector.load %arg20[%c0_47, %c160_48] : memref<1x256xf32, #tpu.memory_space<vmem>>, vector<1x32xf32>
    %c5 = arith.constant 5 : index
    %c0_49 = arith.constant 0 : index
    %54 = vector.load %arg21[%c5, %c0_49] : memref<8x32xf32, #tpu.memory_space<vmem>>, vector<1x32xf32>
    tpu.vector_store %arg21[%c5, %c0_49], %53 {strides = array<i32>} : memref<8x32xf32, #tpu.memory_space<vmem>>, vector<1x32xf32>,
    %c0_50 = arith.constant 0 : index
    %c192_51 = arith.constant 192 : index
    %55 = vector.load %arg20[%c0_50, %c192_51] : memref<1x256xf32, #tpu.memory_space<vmem>>, vector<1x32xf32>
    %c6 = arith.constant 6 : index
    %c0_52 = arith.constant 0 : index
    %56 = vector.load %arg21[%c6, %c0_52] : memref<8x32xf32, #tpu.memory_space<vmem>>, vector<1x32xf32>
    tpu.vector_store %arg21[%c6, %c0_52], %55 {strides = array<i32>} : memref<8x32xf32, #tpu.memory_space<vmem>>, vector<1x32xf32>,
    %c0_53 = arith.constant 0 : index
    %c224_54 = arith.constant 224 : index
    %57 = vector.load %arg20[%c0_53, %c224_54] : memref<1x256xf32, #tpu.memory_space<vmem>>, vector<1x32xf32>
    %c7 = arith.constant 7 : index
    %c0_55 = arith.constant 0 : index
    %58 = vector.load %arg21[%c7, %c0_55] : memref<8x32xf32, #tpu.memory_space<vmem>>, vector<1x32xf32>
    tpu.vector_store %arg21[%c7, %c0_55], %57 {strides = array<i32>} : memref<8x32xf32, #tpu.memory_space<vmem>>, vector<1x32xf32>,
    %c0_56 = arith.constant 0 : index
    %c0_57 = arith.constant 0 : index
    %59 = vector.load %arg21[%c0_56, %c0_57] : memref<8x32xf32, #tpu.memory_space<vmem>>, vector<8x32xf32>
    %c0_58 = arith.constant 0 : index
    %c0_59 = arith.constant 0 : index
    %c0_60 = arith.constant 0 : index
    %60 = vector.load %arg10[%c0_58, %c0_59, %c0_60] : memref<2x32x64xf32, #tpu.memory_space<vmem>>, vector<1x32x64xf32>
    %61 = vector.shape_cast %60 : vector<1x32x64xf32> to vector<32x64xf32>
    %cst_61 = arith.constant dense<0.000000e+00> : vector<8x64xf32>
    %62 = tpu.matmul %59, %61, %cst_61 {dimension_numbers = #tpu.dot_dimension_numbers<[1], [0], [0], [1], [0, 0, 1, 1], [], []>} : vector<8x32xf32>, vector<32x64xf32>, vector<8x64xf32> -> vector<8x64xf32>
    %cst_62 = arith.constant 0.000000e+00 : f32
    %63 = vector.broadcast %cst_62 : f32 to vector<8x64xf32>
    %64 = arith.maximumf %62, %63 : vector<8x64xf32>
    %c0_63 = arith.constant 0 : index
    %c0_64 = arith.constant 0 : index
    %c0_65 = arith.constant 0 : index
    %65 = vector.load %arg11[%c0_63, %c0_64, %c0_65] : memref<2x64x32xf32, #tpu.memory_space<vmem>>, vector<1x64x32xf32>
    %66 = vector.shape_cast %65 : vector<1x64x32xf32> to vector<64x32xf32>
    %cst_66 = arith.constant dense<0.000000e+00> : vector<8x32xf32>
    %67 = tpu.matmul %64, %66, %cst_66 {dimension_numbers = #tpu.dot_dimension_numbers<[1], [0], [0], [1], [0, 0, 1, 1], [], []>} : vector<8x64xf32>, vector<64x32xf32>, vector<8x32xf32> -> vector<8x32xf32>
    %68 = arith.addf %59, %67 : vector<8x32xf32>
    %c0_67 = arith.constant 0 : index
    %c0_68 = arith.constant 0 : index
    %69 = vector.load %arg12[%c0_67, %c0_68] : memref<8x8xf32, #tpu.memory_space<vmem>>, vector<8x8xf32>
    %cst_69 = arith.constant dense<0.000000e+00> : vector<8x32xf32>
    %70 = tpu.matmul %69, %68, %cst_69 {dimension_numbers = #tpu.dot_dimension_numbers<[1], [0], [0], [1], [0, 0, 1, 1], [], []>} : vector<8x8xf32>, vector<8x32xf32>, vector<8x32xf32> -> vector<8x32xf32>
    %71 = arith.subf %68, %70 : vector<8x32xf32>
    %72 = vector.extract_strided_slice %71 {offsets = [0, 0], sizes = [1, 32], strides = [1, 1]} : vector<8x32xf32> to vector<1x32xf32>
    %c0_70 = arith.constant 0 : index
    %c0_71 = arith.constant 0 : index
    %73 = vector.load %arg20[%c0_70, %c0_71] : memref<1x256xf32, #tpu.memory_space<vmem>>, vector<1x32xf32>
    tpu.vector_store %arg20[%c0_70, %c0_71], %72 {strides = array<i32>} : memref<1x256xf32, #tpu.memory_space<vmem>>, vector<1x32xf32>,
    %74 = vector.extract_strided_slice %71 {offsets = [1, 0], sizes = [1, 32], strides = [1, 1]} : vector<8x32xf32> to vector<1x32xf32>
    %c0_72 = arith.constant 0 : index
    %c32_73 = arith.constant 32 : index
    %75 = vector.load %arg20[%c0_72, %c32_73] : memref<1x256xf32, #tpu.memory_space<vmem>>, vector<1x32xf32>
    tpu.vector_store %arg20[%c0_72, %c32_73], %74 {strides = array<i32>} : memref<1x256xf32, #tpu.memory_space<vmem>>, vector<1x32xf32>,
    %76 = vector.extract_strided_slice %71 {offsets = [2, 0], sizes = [1, 32], strides = [1, 1]} : vector<8x32xf32> to vector<1x32xf32>
    %c0_74 = arith.constant 0 : index
    %c64_75 = arith.constant 64 : index
    %77 = vector.load %arg20[%c0_74, %c64_75] : memref<1x256xf32, #tpu.memory_space<vmem>>, vector<1x32xf32>
    tpu.vector_store %arg20[%c0_74, %c64_75], %76 {strides = array<i32>} : memref<1x256xf32, #tpu.memory_space<vmem>>, vector<1x32xf32>,
    %78 = vector.extract_strided_slice %71 {offsets = [3, 0], sizes = [1, 32], strides = [1, 1]} : vector<8x32xf32> to vector<1x32xf32>
    %c0_76 = arith.constant 0 : index
    %c96_77 = arith.constant 96 : index
    %79 = vector.load %arg20[%c0_76, %c96_77] : memref<1x256xf32, #tpu.memory_space<vmem>>, vector<1x32xf32>
    tpu.vector_store %arg20[%c0_76, %c96_77], %78 {strides = array<i32>} : memref<1x256xf32, #tpu.memory_space<vmem>>, vector<1x32xf32>,
    %80 = vector.extract_strided_slice %71 {offsets = [4, 0], sizes = [1, 32], strides = [1, 1]} : vector<8x32xf32> to vector<1x32xf32>
    %c0_78 = arith.constant 0 : index
    %c128_79 = arith.constant 128 : index
    %81 = vector.load %arg20[%c0_78, %c128_79] : memref<1x256xf32, #tpu.memory_space<vmem>>, vector<1x32xf32>
    tpu.vector_store %arg20[%c0_78, %c128_79], %80 {strides = array<i32>} : memref<1x256xf32, #tpu.memory_space<vmem>>, vector<1x32xf32>,
    %82 = vector.extract_strided_slice %71 {offsets = [5, 0], sizes = [1, 32], strides = [1, 1]} : vector<8x32xf32> to vector<1x32xf32>
    %c0_80 = arith.constant 0 : index
    %c160_81 = arith.constant 160 : index
    %83 = vector.load %arg20[%c0_80, %c160_81] : memref<1x256xf32, #tpu.memory_space<vmem>>, vector<1x32xf32>
    tpu.vector_store %arg20[%c0_80, %c160_81], %82 {strides = array<i32>} : memref<1x256xf32, #tpu.memory_space<vmem>>, vector<1x32xf32>,
    %84 = vector.extract_strided_slice %71 {offsets = [6, 0], sizes = [1, 32], strides = [1, 1]} : vector<8x32xf32> to vector<1x32xf32>
    %c0_82 = arith.constant 0 : index
    %c192_83 = arith.constant 192 : index
    %85 = vector.load %arg20[%c0_82, %c192_83] : memref<1x256xf32, #tpu.memory_space<vmem>>, vector<1x32xf32>
    tpu.vector_store %arg20[%c0_82, %c192_83], %84 {strides = array<i32>} : memref<1x256xf32, #tpu.memory_space<vmem>>, vector<1x32xf32>,
    %86 = vector.extract_strided_slice %71 {offsets = [7, 0], sizes = [1, 32], strides = [1, 1]} : vector<8x32xf32> to vector<1x32xf32>
    %c0_84 = arith.constant 0 : index
    %c224_85 = arith.constant 224 : index
    %87 = vector.load %arg20[%c0_84, %c224_85] : memref<1x256xf32, #tpu.memory_space<vmem>>, vector<1x32xf32>
    tpu.vector_store %arg20[%c0_84, %c224_85], %86 {strides = array<i32>} : memref<1x256xf32, #tpu.memory_space<vmem>>, vector<1x32xf32>,
    %c0_86 = arith.constant 0 : index
    %c0_87 = arith.constant 0 : index
    %88 = vector.load %arg20[%c0_86, %c0_87] : memref<1x256xf32, #tpu.memory_space<vmem>>, vector<1x256xf32>
    %c1_88 = arith.constant 1 : index
    %c0_89 = arith.constant 0 : index
    %c0_90 = arith.constant 0 : index
    %89 = vector.load %arg8[%c1_88, %c0_89, %c0_90] : memref<2x256x256xf32, #tpu.memory_space<vmem>>, vector<1x256x256xf32>
    %90 = vector.shape_cast %89 : vector<1x256x256xf32> to vector<256x256xf32>
    %cst_91 = arith.constant dense<0.000000e+00> : vector<1x256xf32>
    %91 = tpu.matmul %88, %90, %cst_91 {dimension_numbers = #tpu.dot_dimension_numbers<[1], [0], [0], [1], [0, 0, 1, 1], [], []>} : vector<1x256xf32>, vector<256x256xf32>, vector<1x256xf32> -> vector<1x256xf32>
    %c1_92 = arith.constant 1 : index
    %c0_93 = arith.constant 0 : index
    %c0_94 = arith.constant 0 : index
    %92 = vector.load %arg9[%c1_92, %c0_93, %c0_94] : memref<2x1x256xf32, #tpu.memory_space<vmem>>, vector<1x1x256xf32>
    %93 = vector.shape_cast %92 : vector<1x1x256xf32> to vector<1x256xf32>
    %94 = arith.addf %91, %93 : vector<1x256xf32>
    %c0_95 = arith.constant 0 : index
    %c0_96 = arith.constant 0 : index
    %95 = vector.load %arg20[%c0_95, %c0_96] : memref<1x256xf32, #tpu.memory_space<vmem>>, vector<1x256xf32>
    tpu.vector_store %arg20[%c0_95, %c0_96], %94 {strides = array<i32>} : memref<1x256xf32, #tpu.memory_space<vmem>>, vector<1x256xf32>,
    %c0_97 = arith.constant 0 : index
    %c0_98 = arith.constant 0 : index
    %96 = vector.load %arg20[%c0_97, %c0_98] : memref<1x256xf32, #tpu.memory_space<vmem>>, vector<1x32xf32>
    %c0_99 = arith.constant 0 : index
    %c0_100 = arith.constant 0 : index
    %97 = vector.load %arg21[%c0_99, %c0_100] : memref<8x32xf32, #tpu.memory_space<vmem>>, vector<1x32xf32>
    tpu.vector_store %arg21[%c0_99, %c0_100], %96 {strides = array<i32>} : memref<8x32xf32, #tpu.memory_space<vmem>>, vector<1x32xf32>,
    %c0_101 = arith.constant 0 : index
    %c32_102 = arith.constant 32 : index
    %98 = vector.load %arg20[%c0_101, %c32_102] : memref<1x256xf32, #tpu.memory_space<vmem>>, vector<1x32xf32>
    %c1_103 = arith.constant 1 : index
    %c0_104 = arith.constant 0 : index
    %99 = vector.load %arg21[%c1_103, %c0_104] : memref<8x32xf32, #tpu.memory_space<vmem>>, vector<1x32xf32>
    tpu.vector_store %arg21[%c1_103, %c0_104], %98 {strides = array<i32>} : memref<8x32xf32, #tpu.memory_space<vmem>>, vector<1x32xf32>,
    %c0_105 = arith.constant 0 : index
    %c64_106 = arith.constant 64 : index
    %100 = vector.load %arg20[%c0_105, %c64_106] : memref<1x256xf32, #tpu.memory_space<vmem>>, vector<1x32xf32>
    %c2_107 = arith.constant 2 : index
    %c0_108 = arith.constant 0 : index
    %101 = vector.load %arg21[%c2_107, %c0_108] : memref<8x32xf32, #tpu.memory_space<vmem>>, vector<1x32xf32>
    tpu.vector_store %arg21[%c2_107, %c0_108], %100 {strides = array<i32>} : memref<8x32xf32, #tpu.memory_space<vmem>>, vector<1x32xf32>,
    %c0_109 = arith.constant 0 : index
    %c96_110 = arith.constant 96 : index
    %102 = vector.load %arg20[%c0_109, %c96_110] : memref<1x256xf32, #tpu.memory_space<vmem>>, vector<1x32xf32>
    %c3_111 = arith.constant 3 : index
    %c0_112 = arith.constant 0 : index
    %103 = vector.load %arg21[%c3_111, %c0_112] : memref<8x32xf32, #tpu.memory_space<vmem>>, vector<1x32xf32>
    tpu.vector_store %arg21[%c3_111, %c0_112], %102 {strides = array<i32>} : memref<8x32xf32, #tpu.memory_space<vmem>>, vector<1x32xf32>,
    %c0_113 = arith.constant 0 : index
    %c128_114 = arith.constant 128 : index
    %104 = vector.load %arg20[%c0_113, %c128_114] : memref<1x256xf32, #tpu.memory_space<vmem>>, vector<1x32xf32>
    %c4_115 = arith.constant 4 : index
    %c0_116 = arith.constant 0 : index
    %105 = vector.load %arg21[%c4_115, %c0_116] : memref<8x32xf32, #tpu.memory_space<vmem>>, vector<1x32xf32>
    tpu.vector_store %arg21[%c4_115, %c0_116], %104 {strides = array<i32>} : memref<8x32xf32, #tpu.memory_space<vmem>>, vector<1x32xf32>,
    %c0_117 = arith.constant 0 : index
    %c160_118 = arith.constant 160 : index
    %106 = vector.load %arg20[%c0_117, %c160_118] : memref<1x256xf32, #tpu.memory_space<vmem>>, vector<1x32xf32>
    %c5_119 = arith.constant 5 : index
    %c0_120 = arith.constant 0 : index
    %107 = vector.load %arg21[%c5_119, %c0_120] : memref<8x32xf32, #tpu.memory_space<vmem>>, vector<1x32xf32>
    tpu.vector_store %arg21[%c5_119, %c0_120], %106 {strides = array<i32>} : memref<8x32xf32, #tpu.memory_space<vmem>>, vector<1x32xf32>,
    %c0_121 = arith.constant 0 : index
    %c192_122 = arith.constant 192 : index
    %108 = vector.load %arg20[%c0_121, %c192_122] : memref<1x256xf32, #tpu.memory_space<vmem>>, vector<1x32xf32>
    %c6_123 = arith.constant 6 : index
    %c0_124 = arith.constant 0 : index
    %109 = vector.load %arg21[%c6_123, %c0_124] : memref<8x32xf32, #tpu.memory_space<vmem>>, vector<1x32xf32>
    tpu.vector_store %arg21[%c6_123, %c0_124], %108 {strides = array<i32>} : memref<8x32xf32, #tpu.memory_space<vmem>>, vector<1x32xf32>,
    %c0_125 = arith.constant 0 : index
    %c224_126 = arith.constant 224 : index
    %110 = vector.load %arg20[%c0_125, %c224_126] : memref<1x256xf32, #tpu.memory_space<vmem>>, vector<1x32xf32>
    %c7_127 = arith.constant 7 : index
    %c0_128 = arith.constant 0 : index
    %111 = vector.load %arg21[%c7_127, %c0_128] : memref<8x32xf32, #tpu.memory_space<vmem>>, vector<1x32xf32>
    tpu.vector_store %arg21[%c7_127, %c0_128], %110 {strides = array<i32>} : memref<8x32xf32, #tpu.memory_space<vmem>>, vector<1x32xf32>,
    %c0_129 = arith.constant 0 : index
    %c0_130 = arith.constant 0 : index
    %112 = vector.load %arg21[%c0_129, %c0_130] : memref<8x32xf32, #tpu.memory_space<vmem>>, vector<8x32xf32>
    %c1_131 = arith.constant 1 : index
    %c0_132 = arith.constant 0 : index
    %c0_133 = arith.constant 0 : index
    %113 = vector.load %arg10[%c1_131, %c0_132, %c0_133] : memref<2x32x64xf32, #tpu.memory_space<vmem>>, vector<1x32x64xf32>
    %114 = vector.shape_cast %113 : vector<1x32x64xf32> to vector<32x64xf32>
    %cst_134 = arith.constant dense<0.000000e+00> : vector<8x64xf32>
    %115 = tpu.matmul %112, %114, %cst_134 {dimension_numbers = #tpu.dot_dimension_numbers<[1], [0], [0], [1], [0, 0, 1, 1], [], []>} : vector<8x32xf32>, vector<32x64xf32>, vector<8x64xf32> -> vector<8x64xf32>
    %cst_135 = arith.constant 0.000000e+00 : f32
    %116 = vector.broadcast %cst_135 : f32 to vector<8x64xf32>
    %117 = arith.maximumf %115, %116 : vector<8x64xf32>
    %c1_136 = arith.constant 1 : index
    %c0_137 = arith.constant 0 : index
    %c0_138 = arith.constant 0 : index
    %118 = vector.load %arg11[%c1_136, %c0_137, %c0_138] : memref<2x64x32xf32, #tpu.memory_space<vmem>>, vector<1x64x32xf32>
    %119 = vector.shape_cast %118 : vector<1x64x32xf32> to vector<64x32xf32>
    %cst_139 = arith.constant dense<0.000000e+00> : vector<8x32xf32>
    %120 = tpu.matmul %117, %119, %cst_139 {dimension_numbers = #tpu.dot_dimension_numbers<[1], [0], [0], [1], [0, 0, 1, 1], [], []>} : vector<8x64xf32>, vector<64x32xf32>, vector<8x32xf32> -> vector<8x32xf32>
    %121 = arith.addf %112, %120 : vector<8x32xf32>
    %c0_140 = arith.constant 0 : index
    %c0_141 = arith.constant 0 : index
    %122 = vector.load %arg12[%c0_140, %c0_141] : memref<8x8xf32, #tpu.memory_space<vmem>>, vector<8x8xf32>
    %cst_142 = arith.constant dense<0.000000e+00> : vector<8x32xf32>
    %123 = tpu.matmul %122, %121, %cst_142 {dimension_numbers = #tpu.dot_dimension_numbers<[1], [0], [0], [1], [0, 0, 1, 1], [], []>} : vector<8x8xf32>, vector<8x32xf32>, vector<8x32xf32> -> vector<8x32xf32>
    %124 = arith.subf %121, %123 : vector<8x32xf32>
    %cst_143 = arith.constant dense<0.000000e+00> : vector<8xf32>
    %125 = vector.multi_reduction <add>, %124, %cst_143 [1] : vector<8x32xf32> to vector<8xf32>
    %126 = vector.shape_cast %125 : vector<8xf32> to vector<8x1xf32>
    %cst_144 = arith.constant 3.200000e+01 : f32
    %127 = vector.broadcast %cst_144 : f32 to vector<8x1xf32>
    %128 = arith.divf %126, %127 : vector<8x1xf32>
    %129 = vector.broadcast %128 : vector<8x1xf32> to vector<8x32xf32>
    %130 = arith.subf %124, %129 : vector<8x32xf32>
    %131 = arith.mulf %130, %130 : vector<8x32xf32>
    %cst_145 = arith.constant dense<0.000000e+00> : vector<8xf32>
    %132 = vector.multi_reduction <add>, %131, %cst_145 [1] : vector<8x32xf32> to vector<8xf32>
    %133 = vector.shape_cast %132 : vector<8xf32> to vector<8x1xf32>
    %cst_146 = arith.constant 3.200000e+01 : f32
    %134 = vector.broadcast %cst_146 : f32 to vector<8x1xf32>
    %135 = arith.divf %133, %134 : vector<8x1xf32>
    %136 = vector.broadcast %128 : vector<8x1xf32> to vector<8x32xf32>
    %137 = arith.subf %124, %136 : vector<8x32xf32>
    %cst_147 = arith.constant 9.99999974E-6 : f32
    %138 = vector.broadcast %cst_147 : f32 to vector<8x1xf32>
    %139 = arith.addf %135, %138 : vector<8x1xf32>
    %140 = math.rsqrt %139 : vector<8x1xf32>
    %141 = vector.broadcast %140 : vector<8x1xf32> to vector<8x32xf32>
    %142 = arith.mulf %137, %141 : vector<8x32xf32>
    %c0_148 = arith.constant 0 : index
    %c0_149 = arith.constant 0 : index
    %143 = vector.load %arg13[%c0_148, %c0_149] : memref<1x32xf32, #tpu.memory_space<vmem>>, vector<1x32xf32>
    %144 = vector.broadcast %143 : vector<1x32xf32> to vector<8x32xf32>
    %145 = arith.mulf %142, %144 : vector<8x32xf32>
    %c0_150 = arith.constant 0 : index
    %c0_151 = arith.constant 0 : index
    %146 = vector.load %arg14[%c0_150, %c0_151] : memref<1x32xf32, #tpu.memory_space<vmem>>, vector<1x32xf32>
    %147 = vector.broadcast %146 : vector<1x32xf32> to vector<8x32xf32>
    %148 = arith.addf %145, %147 : vector<8x32xf32>
    %cst_152 = arith.constant dense<0.000000e+00> : vector<32xf32>
    %149 = vector.multi_reduction <add>, %148, %cst_152 [0] : vector<8x32xf32> to vector<32xf32>
    %150 = vector.shape_cast %149 : vector<32xf32> to vector<1x32xf32>
    %cst_153 = arith.constant 8.000000e+00 : f32
    %151 = vector.broadcast %cst_153 : f32 to vector<1x32xf32>
    %152 = arith.divf %150, %151 : vector<1x32xf32>
    %153 = vector.broadcast %152 : vector<1x32xf32> to vector<8x32xf32>
    %154 = arith.subf %148, %153 : vector<8x32xf32>
    %155 = vector.extract_strided_slice %154 {offsets = [7, 0], sizes = [1, 32], strides = [1, 1]} : vector<8x32xf32> to vector<1x32xf32>
    %c0_154 = arith.constant 0 : index
    %c0_155 = arith.constant 0 : index
    %c0_156 = arith.constant 0 : index
    %156 = vector.load %arg3[%c0_154, %c0_155, %c0_156] : memref<1x8x24xf32, #tpu.memory_space<vmem>>, vector<1x8x24xf32>
    %157 = vector.shape_cast %156 : vector<1x8x24xf32> to vector<8x24xf32>
    %158 = vector.extract_strided_slice %157 {offsets = [7, 0], sizes = [1, 24], strides = [1, 1]} : vector<8x24xf32> to vector<1x24xf32>
    %c0_157 = arith.constant 0 : index
    %c0_158 = arith.constant 0 : index
    %159 = vector.load %arg15[%c0_157, %c0_158] : memref<32x50xf32, #tpu.memory_space<vmem>>, vector<32x50xf32>
    %cst_159 = arith.constant dense<0.000000e+00> : vector<1x50xf32>
    %160 = tpu.matmul %155, %159, %cst_159 {dimension_numbers = #tpu.dot_dimension_numbers<[1], [0], [0], [1], [0, 0, 1, 1], [], []>} : vector<1x32xf32>, vector<32x50xf32>, vector<1x50xf32> -> vector<1x50xf32>
    %c0_160 = arith.constant 0 : index
    %c0_161 = arith.constant 0 : index
    %161 = vector.load %arg16[%c0_160, %c0_161] : memref<24x50xf32, #tpu.memory_space<vmem>>, vector<24x50xf32>
    %cst_162 = arith.constant dense<0.000000e+00> : vector<1x50xf32>
    %162 = tpu.matmul %158, %161, %cst_162 {dimension_numbers = #tpu.dot_dimension_numbers<[1], [0], [0], [1], [0, 0, 1, 1], [], []>} : vector<1x24xf32>, vector<24x50xf32>, vector<1x50xf32> -> vector<1x50xf32>
    %163 = arith.addf %160, %162 : vector<1x50xf32>
    %c0_163 = arith.constant 0 : index
    %c0_164 = arith.constant 0 : index
    %164 = vector.load %arg17[%c0_163, %c0_164] : memref<1x50xf32, #tpu.memory_space<vmem>>, vector<1x50xf32>
    %165 = arith.addf %163, %164 : vector<1x50xf32>
    %c0_165 = arith.constant 0 : index
    %c0_166 = arith.constant 0 : index
    %c0_167 = arith.constant 0 : index
    %166 = vector.load %arg18[%c0_165, %c0_166, %c0_167] : memref<1x1x50xf32, #tpu.memory_space<vmem>>, vector<1x1x50xf32>
    %167 = vector.shape_cast %166 : vector<1x1x50xf32> to vector<1x50xf32>
    %168 = vector.shape_cast %165 : vector<1x50xf32> to vector<1x1x50xf32>
    tpu.vector_store %arg18[%c0_165, %c0_166, %c0_167], %168 {strides = array<i32>} : memref<1x1x50xf32, #tpu.memory_space<vmem>>, vector<1x1x50xf32>,
    %cst_168 = arith.constant dense<0xFF800000> : vector<1xf32>
    %169 = vector.multi_reduction <maximumf>, %165, %cst_168 [1] : vector<1x50xf32> to vector<1xf32>
    %170 = vector.shape_cast %169 : vector<1xf32> to vector<1x1xf32>
    %171 = vector.broadcast %170 : vector<1x1xf32> to vector<1x50xf32>
    %172 = arith.subf %165, %171 : vector<1x50xf32>
    %173 = math.exp %172 : vector<1x50xf32>
    %cst_169 = arith.constant dense<0.000000e+00> : vector<1xf32>
    %174 = vector.multi_reduction <add>, %173, %cst_169 [1] : vector<1x50xf32> to vector<1xf32>
    %175 = vector.shape_cast %174 : vector<1xf32> to vector<1x1xf32>
    %176 = math.log %175 : vector<1x1xf32>
    %177 = arith.addf %176, %170 : vector<1x1xf32>
    %178 = tpu.iota {dimensions = array<i32: 1>} : vector<1x50xi32>
    %c0_170 = arith.constant 0 : index
    %c0_171 = arith.constant 0 : index
    %c0_172 = arith.constant 0 : index
    %179 = vector.load %arg4[%c0_170, %c0_171, %c0_172] : memref<1x1x1xi32, #tpu.memory_space<vmem>>, vector<1x1x1xi32>
    %180 = vector.shape_cast %179 : vector<1x1x1xi32> to vector<1x1xi32>
    %181 = vector.broadcast %180 : vector<1x1xi32> to vector<1x50xi32>
    %182 = arith.cmpi eq, %178, %181 : vector<1x50xi32>
    %cst_173 = arith.constant 0.000000e+00 : f32
    %183 = vector.broadcast %cst_173 : f32 to vector<1x50xf32>
    %184 = arith.select %182, %165, %183 : vector<1x50xi1>, vector<1x50xf32>
    %cst_174 = arith.constant dense<0.000000e+00> : vector<1xf32>
    %185 = vector.multi_reduction <add>, %184, %cst_174 [1] : vector<1x50xf32> to vector<1xf32>
    %186 = vector.shape_cast %185 : vector<1xf32> to vector<1x1xf32>
    %187 = arith.subf %177, %186 : vector<1x1xf32>
    %c0_175 = arith.constant 0 : index
    %c0_176 = arith.constant 0 : index
    %c0_177 = arith.constant 0 : index
    %188 = vector.load %arg19[%c0_175, %c0_176, %c0_177] : memref<1x1x1xf32, #tpu.memory_space<vmem>>, vector<1x1x1xf32>
    %189 = vector.shape_cast %188 : vector<1x1x1xf32> to vector<1x1xf32>
    %190 = vector.shape_cast %187 : vector<1x1xf32> to vector<1x1x1xf32>
    tpu.vector_store %arg19[%c0_175, %c0_176, %c0_177], %190 {strides = array<i32>} : memref<1x1x1xf32, #tpu.memory_space<vmem>>, vector<1x1x1xf32>,
    return
  }
  func.func @transform_0(%arg0: i32) -> (i32, i32, i32) {
    %c0_i32 = arith.constant 0 : i32
    %c0_i32_0 = arith.constant 0 : i32
    %c0_i32_1 = arith.constant 0 : i32
    return %arg0, %c0_i32, %c0_i32_0 : i32, i32, i32
  }
  func.func @transform_1(%arg0: i32) -> (i32, i32, i32) {
    %c0_i32 = arith.constant 0 : i32
    %c0_i32_0 = arith.constant 0 : i32
    %c0_i32_1 = arith.constant 0 : i32
    return %arg0, %c0_i32, %c0_i32_0 : i32, i32, i32
  }
  func.func @transform_2(%arg0: i32) -> (i32, i32, i32) {
    %c0_i32 = arith.constant 0 : i32
    %c0_i32_0 = arith.constant 0 : i32
    %c0_i32_1 = arith.constant 0 : i32
    return %arg0, %c0_i32, %c0_i32_0 : i32, i32, i32
  }
  func.func @transform_3(%arg0: i32) -> (i32, i32, i32) {
    %c0_i32 = arith.constant 0 : i32
    %c0_i32_0 = arith.constant 0 : i32
    %c0_i32_1 = arith.constant 0 : i32
    return %arg0, %c0_i32, %c0_i32_0 : i32, i32, i32
  }
  func.func @transform_4(%arg0: i32) -> (i32, i32) {
    %c0_i32 = arith.constant 0 : i32
    %c0_i32_0 = arith.constant 0 : i32
    %c0_i32_1 = arith.constant 0 : i32
    return %c0_i32, %c0_i32_0 : i32, i32
  }
  func.func @transform_5(%arg0: i32) -> (i32, i32) {
    %c0_i32 = arith.constant 0 : i32
    %c0_i32_0 = arith.constant 0 : i32
    %c0_i32_1 = arith.constant 0 : i32
    return %c0_i32, %c0_i32_0 : i32, i32
  }
  func.func @transform_6(%arg0: i32) -> (i32, i32) {
    %c0_i32 = arith.constant 0 : i32
    %c0_i32_0 = arith.constant 0 : i32
    %c0_i32_1 = arith.constant 0 : i32
    return %c0_i32, %c0_i32_0 : i32, i32
  }
  func.func @transform_7(%arg0: i32) -> (i32, i32, i32) {
    %c0_i32 = arith.constant 0 : i32
    %c0_i32_0 = arith.constant 0 : i32
    %c0_i32_1 = arith.constant 0 : i32
    %c0_i32_2 = arith.constant 0 : i32
    return %c0_i32, %c0_i32_0, %c0_i32_1 : i32, i32, i32
  }
  func.func @transform_8(%arg0: i32) -> (i32, i32, i32) {
    %c0_i32 = arith.constant 0 : i32
    %c0_i32_0 = arith.constant 0 : i32
    %c0_i32_1 = arith.constant 0 : i32
    %c0_i32_2 = arith.constant 0 : i32
    return %c0_i32, %c0_i32_0, %c0_i32_1 : i32, i32, i32
  }
  func.func @transform_9(%arg0: i32) -> (i32, i32, i32) {
    %c0_i32 = arith.constant 0 : i32
    %c0_i32_0 = arith.constant 0 : i32
    %c0_i32_1 = arith.constant 0 : i32
    %c0_i32_2 = arith.constant 0 : i32
    return %c0_i32, %c0_i32_0, %c0_i32_1 : i32, i32, i32
  }
  func.func @transform_10(%arg0: i32) -> (i32, i32, i32) {
    %c0_i32 = arith.constant 0 : i32
    %c0_i32_0 = arith.constant 0 : i32
    %c0_i32_1 = arith.constant 0 : i32
    %c0_i32_2 = arith.constant 0 : i32
    return %c0_i32, %c0_i32_0, %c0_i32_1 : i32, i32, i32
  }
  func.func @transform_11(%arg0: i32) -> (i32, i32) {
    %c0_i32 = arith.constant 0 : i32
    %c0_i32_0 = arith.constant 0 : i32
    %c0_i32_1 = arith.constant 0 : i32
    return %c0_i32, %c0_i32_0 : i32, i32
  }
  func.func @transform_12(%arg0: i32) -> (i32, i32) {
    %c0_i32 = arith.constant 0 : i32
    %c0_i32_0 = arith.constant 0 : i32
    %c0_i32_1 = arith.constant 0 : i32
    return %c0_i32, %c0_i32_0 : i32, i32
  }
  func.func @transform_13(%arg0: i32) -> (i32, i32) {
    %c0_i32 = arith.constant 0 : i32
    %c0_i32_0 = arith.constant 0 : i32
    %c0_i32_1 = arith.constant 0 : i32
    return %c0_i32, %c0_i32_0 : i32, i32
  }
  func.func @transform_14(%arg0: i32) -> (i32, i32) {
    %c0_i32 = arith.constant 0 : i32
    %c0_i32_0 = arith.constant 0 : i32
    %c0_i32_1 = arith.constant 0 : i32
    return %c0_i32, %c0_i32_0 : i32, i32
  }
  func.func @transform_15(%arg0: i32) -> (i32, i32) {
    %c0_i32 = arith.constant 0 : i32
    %c0_i32_0 = arith.constant 0 : i32
    %c0_i32_1 = arith.constant 0 : i32
    return %c0_i32, %c0_i32_0 : i32, i32
  }
  func.func @transform_16(%arg0: i32) -> (i32, i32) {
    %c0_i32 = arith.constant 0 : i32
    %c0_i32_0 = arith.constant 0 : i32
    %c0_i32_1 = arith.constant 0 : i32
    return %c0_i32, %c0_i32_0 : i32, i32
  }
  func.func @transform_17(%arg0: i32) -> (i32, i32, i32) {
    %c0_i32 = arith.constant 0 : i32
    %c0_i32_0 = arith.constant 0 : i32
    %c0_i32_1 = arith.constant 0 : i32
    return %arg0, %c0_i32, %c0_i32_0 : i32, i32, i32
  }
  func.func @transform_18(%arg0: i32) -> (i32, i32, i32) {
    %c0_i32 = arith.constant 0 : i32
    %c0_i32_0 = arith.constant 0 : i32
    %c0_i32_1 = arith.constant 0 : i32
    return %arg0, %c0_i32, %c0_i32_0 : i32, i32, i32
  }
}

</mosaic_0001>

<llo_original>
// kernel: tpu_custom_call.1
$region0: #{tpu_custom_call.1}
  #allocation0 [shape = 'u32[]', space=smem, size = 0x4, offset = 0x4, fixed_abs, tag = 'smem constant byte address 0x4 - core index']
  #allocation1 [shape = 'u32[144,128]{1,0:T(1,128)}', space=vmem, size = 0x12000, scoped, tag = 'internal scratch']
  #allocation2 [shape = 'f32[1,256]{1,0:T(1,128)}', space=vmem, size = 0x400, scoped, tag = 'scratch operand']
  #allocation3 [shape = 'f32[8,32]{1,0:T(8,128)}', space=vmem, size = 0x1000, scoped, tag = 'scratch operand']
  %s0 = inlined_call_operand.vmem [shape: s32[2,8,1], index: 0, kind: input, shape index: {}]
  %s1 = inlined_call_operand.vmem [shape: f32[2,8,1], index: 1, kind: input, shape index: {}]
  %s2 = inlined_call_operand.vmem [shape: f32[2,8,24], index: 2, kind: input, shape index: {}]
  %s3 = inlined_call_operand.vmem [shape: s32[2,1,1], index: 3, kind: input, shape index: {}]
  %s4 = inlined_call_operand.vmem [shape: f32[50,32], index: 4, kind: input, shape index: {}]
  %s5 = inlined_call_operand.vmem [shape: f32[1,32], index: 5, kind: input, shape index: {}]
  %s6 = inlined_call_operand.vmem [shape: f32[1,32], index: 6, kind: input, shape index: {}]
  %s7 = inlined_call_operand.hbm [shape: f32[2,256,256], index: 7, kind: input, shape index: {}]
  %s8 = inlined_call_operand.vmem [shape: f32[2,1,256], index: 8, kind: input, shape index: {}]
  %s9 = inlined_call_operand.vmem [shape: f32[2,32,64], index: 9, kind: input, shape index: {}]
  %s10 = inlined_call_operand.vmem [shape: f32[2,64,32], index: 10, kind: input, shape index: {}]
  %s11 = inlined_call_operand.vmem [shape: f32[8,8], index: 11, kind: input, shape index: {}]
  %s12 = inlined_call_operand.vmem [shape: f32[1,32], index: 12, kind: input, shape index: {}]
  %s13 = inlined_call_operand.vmem [shape: f32[1,32], index: 13, kind: input, shape index: {}]
  %s14 = inlined_call_operand.vmem [shape: f32[32,50], index: 14, kind: input, shape index: {}]
  %s15 = inlined_call_operand.vmem [shape: f32[24,50], index: 15, kind: input, shape index: {}]
  %s16 = inlined_call_operand.vmem [shape: f32[1,50], index: 16, kind: input, shape index: {}]
  %s17 = inlined_call_operand.hbm [shape: f32[2,1,50], index: 17, kind: output, shape index: {0}]
  %s18 = inlined_call_operand.vmem [shape: f32[2,1,1], index: 18, kind: output, shape index: {1}]
  %19 = xla_tuple %s17, %s18
  %s20 = sld [smem:[#allocation0]]
  $region113: #{tpu_custom_call.1} parent=0
    _
  %s22 = ssub.s32 1, %s20
  %s23 = scalar_select 0, %s22, %s20
  $region1: #{tpu_custom_call.1} parent=0
    #allocation4 [shape = 'u8[524288]{0}', space=vmem, size = 0x80000, scoped, tag = 'input window, operand 7, single buffered']
    #allocation5 [shape = 's32[2]{0}', space=sflag, size = 0x8, scoped, tag = 'scoped memory for tpu_custom_call.1']
    #allocation6 [shape = 's32[2]{0}', space=sflag, size = 0x8, scoped, tag = 'scoped memory for tpu_custom_call.1']
    #allocation7 [shape = 'u8[1024]{0}', space=vmem, size = 0x400, scoped, tag = 'output window, operand 0']
    %24 = vsyncpa [#allocation5], 0
    %25 = vsyncpa [#allocation6], 0
    %s26 = scalar_lea.sflag [#allocation6], 1
    %27 = vsyncpa %s26, 0
    loop: start=0, step=1, limit=4
    $region2: #{tpu_custom_call.1} parent=1 // loop_pre_header
      _
    $region3: #{tpu_custom_call.1} parent=1 // loop_header
      %s29 = sphi 0, %s33
      %p30 = scmp.ge.s32.totalorder %s29, 4
      %s39 = sphi 0, %s41
      %s42 = sphi 0, %s39
      %s43 = sphi 0, %s42
      %s59 = sphi 0, %s43
      %s65 = sphi 0, %s67
      %s68 = sphi 0, %s65
      %s69 = sphi 0, %s68
      %s85 = sphi 0, %s69
      %s91 = sphi 0, %s93
      %s94 = sphi 0, %s91
      %s95 = sphi 0, %s94
      %s111 = sphi 0, %s95
      %s117 = sphi 0, %s119
      %s120 = sphi 0, %s117
      %s121 = sphi 0, %s120
      %s137 = sphi 0, %s121
      %s141 = sphi 0, %s141
      %s143 = sphi 0, %s141
      %s144 = sphi 0, %s143
      %s158 = sphi 0, %s144
      %s162 = sphi 0, %s162
      %s164 = sphi 0, %s162
      %s165 = sphi 0, %s164
      %s179 = sphi 0, %s165
      %s183 = sphi 0, %s183
      %s185 = sphi 0, %s183
      %s186 = sphi 0, %s185
      %s200 = sphi 0, %s186
      %s204 = sphi 0, %s204
      %s206 = sphi 0, %s204
      %s207 = sphi 0, %s206
      %s221 = sphi 0, %s207
      %s225 = sphi 0, %s225
      %s227 = sphi 0, %s225
      %s228 = sphi 0, %s227
      %s242 = sphi 0, %s228
      %s246 = sphi 0, %s246
      %s248 = sphi 0, %s246
      %s249 = sphi 0, %s248
      %s263 = sphi 0, %s249
      %s267 = sphi 0, %s267
      %s269 = sphi 0, %s267
      %s270 = sphi 0, %s269
      %s284 = sphi 0, %s270
      %s288 = sphi 0, %s288
      %s290 = sphi 0, %s288
      %s291 = sphi 0, %s290
      %s305 = sphi 0, %s291
      %s309 = sphi 0, %s309
      %s311 = sphi 0, %s309
      %s312 = sphi 0, %s311
      %s326 = sphi 0, %s312
      %s330 = sphi 0, %s330
      %s332 = sphi 0, %s330
      %s333 = sphi 0, %s332
      %s347 = sphi 0, %s333
      %s351 = sphi 0, %s351
      %s353 = sphi 0, %s351
      %s354 = sphi 0, %s353
      %s368 = sphi 0, %s354
      %s372 = sphi 0, %s372
      %s374 = sphi 0, %s372
      %s375 = sphi 0, %s374
      %s389 = sphi 0, %s375
      %s393 = sphi 0, %s393
      %s395 = sphi 0, %s393
      %s396 = sphi 0, %s395
      %s410 = sphi 0, %s396
      %s416 = sphi 0, %s418
      %s419 = sphi 0, %s416
      %s420 = sphi 0, %s419
      %s436 = sphi 0, %s420
      %s442 = sphi 0, %s444
      %s445 = sphi 0, %s442
      %s446 = sphi 0, %s445
      %s462 = sphi 0, %s446
    $region4: #{tpu_custom_call.1} parent=1 // loop_header_branch
      %32 = sbr.rel (%p30) target = $region8
    $region5: #{tpu_custom_call.1} parent=1 // loop_body
      %s34 = ssub.s32 %s29, 1
      %s35 = ssub.s32 %s29, 2
      %s36 = sadd.s32 %s29, 1
      %s37 = ssub.s32 %s29, %s36
      %p38 = scmp.eq.s32.totalorder %s37, 0
      %s40 = sadd.s32 %s39, 1
      %s41 = scalar_select %p38, %s39, %s40
      %p44 = pneg %p38
      %p45 = scmp.eq.s32.totalorder %s29, 1
      %p46 = por %p44, %p45
      %p47 = scmp.ne.s32.totalorder %s39, %s42
      %p48 = scmp.eq.s32.totalorder %s29, 0
      %p49 = por %p47, %p48
      %p50 = scmp.ne.s32.totalorder %s39, %s42
      %p51 = scmp.eq.s32.totalorder %s34, 1
      %p52 = por %p50, %p51
      %p53 = scmp.ne.s32.totalorder %s42, %s43
      %p54 = scmp.eq.s32.totalorder %s34, 0
      %p55 = por %p53, %p54
      %p56 = scmp.ne.s32.totalorder %s42, %s43
      %p57 = scmp.eq.s32.totalorder %s35, 1
      %p58 = por %p56, %p57
      %p60 = scmp.ne.s32.totalorder %s43, %s59
      %p61 = scmp.eq.s32.totalorder %s35, 0
      %p62 = por %p60, %p61
      %s63 = ssub.s32 %s29, %s36
      %p64 = scmp.eq.s32.totalorder %s63, 0
      %s66 = sadd.s32 %s65, 1
      %s67 = scalar_select %p64, %s65, %s66
      %p70 = pneg %p64
      %p71 = scmp.eq.s32.totalorder %s29, 1
      %p72 = por %p70, %p71
      %p73 = scmp.ne.s32.totalorder %s65, %s68
      %p74 = scmp.eq.s32.totalorder %s29, 0
      %p75 = por %p73, %p74
      %p76 = scmp.ne.s32.totalorder %s65, %s68
      %p77 = scmp.eq.s32.totalorder %s34, 1
      %p78 = por %p76, %p77
      %p79 = scmp.ne.s32.totalorder %s68, %s69
      %p80 = scmp.eq.s32.totalorder %s34, 0
      %p81 = por %p79, %p80
      %p82 = scmp.ne.s32.totalorder %s68, %s69
      %p83 = scmp.eq.s32.totalorder %s35, 1
      %p84 = por %p82, %p83
      %p86 = scmp.ne.s32.totalorder %s69, %s85
      %p87 = scmp.eq.s32.totalorder %s35, 0
      %p88 = por %p86, %p87
      %s89 = ssub.s32 %s29, %s36
      %p90 = scmp.eq.s32.totalorder %s89, 0
      %s92 = sadd.s32 %s91, 1
      %s93 = scalar_select %p90, %s91, %s92
      %p96 = pneg %p90
      %p97 = scmp.eq.s32.totalorder %s29, 1
      %p98 = por %p96, %p97
      %p99 = scmp.ne.s32.totalorder %s91, %s94
      %p100 = scmp.eq.s32.totalorder %s29, 0
      %p101 = por %p99, %p100
      %p102 = scmp.ne.s32.totalorder %s91, %s94
      %p103 = scmp.eq.s32.totalorder %s34, 1
      %p104 = por %p102, %p103
      %p105 = scmp.ne.s32.totalorder %s94, %s95
      %p106 = scmp.eq.s32.totalorder %s34, 0
      %p107 = por %p105, %p106
      %p108 = scmp.ne.s32.totalorder %s94, %s95
      %p109 = scmp.eq.s32.totalorder %s35, 1
      %p110 = por %p108, %p109
      %p112 = scmp.ne.s32.totalorder %s95, %s111
      %p113 = scmp.eq.s32.totalorder %s35, 0
      %p114 = por %p112, %p113
      %s115 = ssub.s32 %s29, %s36
      %p116 = scmp.eq.s32.totalorder %s115, 0
      %s118 = sadd.s32 %s117, 1
      %s119 = scalar_select %p116, %s117, %s118
      %p122 = pneg %p116
      %p123 = scmp.eq.s32.totalorder %s29, 1
      %p124 = por %p122, %p123
      %p125 = scmp.ne.s32.totalorder %s117, %s120
      %p126 = scmp.eq.s32.totalorder %s29, 0
      %p127 = por %p125, %p126
      %p128 = scmp.ne.s32.totalorder %s117, %s120
      %p129 = scmp.eq.s32.totalorder %s34, 1
      %p130 = por %p128, %p129
      %p131 = scmp.ne.s32.totalorder %s120, %s121
      %p132 = scmp.eq.s32.totalorder %s34, 0
      %p133 = por %p131, %p132
      %p134 = scmp.ne.s32.totalorder %s120, %s121
      %p135 = scmp.eq.s32.totalorder %s35, 1
      %p136 = por %p134, %p135
      %p138 = scmp.ne.s32.totalorder %s121, %s137
      %p139 = scmp.eq.s32.totalorder %s35, 0
      %p140 = por %p138, %p139
      %s142 = sadd.s32 %s141, 1
      %p145 = scmp.eq.s32.totalorder %s29, 1
      %p146 = scmp.ne.s32.totalorder %s141, %s143
      %p147 = scmp.eq.s32.totalorder %s29, 0
      %p148 = por %p146, %p147
      %p149 = scmp.ne.s32.totalorder %s141, %s143
      %p150 = scmp.eq.s32.totalorder %s34, 1
      %p151 = por %p149, %p150
      %p152 = scmp.ne.s32.totalorder %s143, %s144
      %p153 = scmp.eq.s32.totalorder %s34, 0
      %p154 = por %p152, %p153
      %p155 = scmp.ne.s32.totalorder %s143, %s144
      %p156 = scmp.eq.s32.totalorder %s35, 1
      %p157 = por %p155, %p156
      %p159 = scmp.ne.s32.totalorder %s144, %s158
      %p160 = scmp.eq.s32.totalorder %s35, 0
      %p161 = por %p159, %p160
      %s163 = sadd.s32 %s162, 1
      %p166 = scmp.eq.s32.totalorder %s29, 1
      %p167 = scmp.ne.s32.totalorder %s162, %s164
      %p168 = scmp.eq.s32.totalorder %s29, 0
      %p169 = por %p167, %p168
      %p170 = scmp.ne.s32.totalorder %s162, %s164
      %p171 = scmp.eq.s32.totalorder %s34, 1
      %p172 = por %p170, %p171
      %p173 = scmp.ne.s32.totalorder %s164, %s165
      %p174 = scmp.eq.s32.totalorder %s34, 0
      %p175 = por %p173, %p174
      %p176 = scmp.ne.s32.totalorder %s164, %s165
      %p177 = scmp.eq.s32.totalorder %s35, 1
      %p178 = por %p176, %p177
      %p180 = scmp.ne.s32.totalorder %s165, %s179
      %p181 = scmp.eq.s32.totalorder %s35, 0
      %p182 = por %p180, %p181
      %s184 = sadd.s32 %s183, 1
      %p187 = scmp.eq.s32.totalorder %s29, 1
      %p188 = scmp.ne.s32.totalorder %s183, %s185
      %p189 = scmp.eq.s32.totalorder %s29, 0
      %p190 = por %p188, %p189
      %p191 = scmp.ne.s32.totalorder %s183, %s185
      %p192 = scmp.eq.s32.totalorder %s34, 1
      %p193 = por %p191, %p192
      %p194 = scmp.ne.s32.totalorder %s185, %s186
      %p195 = scmp.eq.s32.totalorder %s34, 0
      %p196 = por %p194, %p195
      %p197 = scmp.ne.s32.totalorder %s185, %s186
      %p198 = scmp.eq.s32.totalorder %s35, 1
      %p199 = por %p197, %p198
      %p201 = scmp.ne.s32.totalorder %s186, %s200
      %p202 = scmp.eq.s32.totalorder %s35, 0
      %p203 = por %p201, %p202
      %s205 = sadd.s32 %s204, 1
      %p208 = scmp.eq.s32.totalorder %s29, 1
      %p209 = scmp.ne.s32.totalorder %s204, %s206
      %p210 = scmp.eq.s32.totalorder %s29, 0
      %p211 = por %p209, %p210
      %p212 = scmp.ne.s32.totalorder %s204, %s206
      %p213 = scmp.eq.s32.totalorder %s34, 1
      %p214 = por %p212, %p213
      %p215 = scmp.ne.s32.totalorder %s206, %s207
      %p216 = scmp.eq.s32.totalorder %s34, 0
      %p217 = por %p215, %p216
      %p218 = scmp.ne.s32.totalorder %s206, %s207
      %p219 = scmp.eq.s32.totalorder %s35, 1
      %p220 = por %p218, %p219
      %p222 = scmp.ne.s32.totalorder %s207, %s221
      %p223 = scmp.eq.s32.totalorder %s35, 0
      %p224 = por %p222, %p223
      %s226 = sadd.s32 %s225, 1
      %p229 = scmp.eq.s32.totalorder %s29, 1
      %p230 = scmp.ne.s32.totalorder %s225, %s227
      %p231 = scmp.eq.s32.totalorder %s29, 0
      %p232 = por %p230, %p231
      %p233 = scmp.ne.s32.totalorder %s225, %s227
      %p234 = scmp.eq.s32.totalorder %s34, 1
      %p235 = por %p233, %p234
      %p236 = scmp.ne.s32.totalorder %s227, %s228
      %p237 = scmp.eq.s32.totalorder %s34, 0
      %p238 = por %p236, %p237
      %p239 = scmp.ne.s32.totalorder %s227, %s228
      %p240 = scmp.eq.s32.totalorder %s35, 1
      %p241 = por %p239, %p240
      %p243 = scmp.ne.s32.totalorder %s228, %s242
      %p244 = scmp.eq.s32.totalorder %s35, 0
      %p245 = por %p243, %p244
      %s247 = sadd.s32 %s246, 1
      %p250 = scmp.eq.s32.totalorder %s29, 1
      %p251 = scmp.ne.s32.totalorder %s246, %s248
      %p252 = scmp.eq.s32.totalorder %s29, 0
      %p253 = por %p251, %p252
      %p254 = scmp.ne.s32.totalorder %s246, %s248
      %p255 = scmp.eq.s32.totalorder %s34, 1
      %p256 = por %p254, %p255
      %p257 = scmp.ne.s32.totalorder %s248, %s249
      %p258 = scmp.eq.s32.totalorder %s34, 0
      %p259 = por %p257, %p258
      %p260 = scmp.ne.s32.totalorder %s248, %s249
      %p261 = scmp.eq.s32.totalorder %s35, 1
      %p262 = por %p260, %p261
      %p264 = scmp.ne.s32.totalorder %s249, %s263
      %p265 = scmp.eq.s32.totalorder %s35, 0
      %p266 = por %p264, %p265
      %s268 = sadd.s32 %s267, 1
      %p271 = scmp.eq.s32.totalorder %s29, 1
      %p272 = scmp.ne.s32.totalorder %s267, %s269
      %p273 = scmp.eq.s32.totalorder %s29, 0
      %p274 = por %p272, %p273
      %p275 = scmp.ne.s32.totalorder %s267, %s269
      %p276 = scmp.eq.s32.totalorder %s34, 1
      %p277 = por %p275, %p276
      %p278 = scmp.ne.s32.totalorder %s269, %s270
      %p279 = scmp.eq.s32.totalorder %s34, 0
      %p280 = por %p278, %p279
      %p281 = scmp.ne.s32.totalorder %s269, %s270
      %p282 = scmp.eq.s32.totalorder %s35, 1
      %p283 = por %p281, %p282
      %p285 = scmp.ne.s32.totalorder %s270, %s284
      %p286 = scmp.eq.s32.totalorder %s35, 0
      %p287 = por %p285, %p286
      %s289 = sadd.s32 %s288, 1
      %p292 = scmp.eq.s32.totalorder %s29, 1
      %p293 = scmp.ne.s32.totalorder %s288, %s290
      %p294 = scmp.eq.s32.totalorder %s29, 0
      %p295 = por %p293, %p294
      %p296 = scmp.ne.s32.totalorder %s288, %s290
      %p297 = scmp.eq.s32.totalorder %s34, 1
      %p298 = por %p296, %p297
      %p299 = scmp.ne.s32.totalorder %s290, %s291
      %p300 = scmp.eq.s32.totalorder %s34, 0
      %p301 = por %p299, %p300
      %p302 = scmp.ne.s32.totalorder %s290, %s291
      %p303 = scmp.eq.s32.totalorder %s35, 1
      %p304 = por %p302, %p303
      %p306 = scmp.ne.s32.totalorder %s291, %s305
      %p307 = scmp.eq.s32.totalorder %s35, 0
      %p308 = por %p306, %p307
      %s310 = sadd.s32 %s309, 1
      %p313 = scmp.eq.s32.totalorder %s29, 1
      %p314 = scmp.ne.s32.totalorder %s309, %s311
      %p315 = scmp.eq.s32.totalorder %s29, 0
      %p316 = por %p314, %p315
      %p317 = scmp.ne.s32.totalorder %s309, %s311
      %p318 = scmp.eq.s32.totalorder %s34, 1
      %p319 = por %p317, %p318
      %p320 = scmp.ne.s32.totalorder %s311, %s312
      %p321 = scmp.eq.s32.totalorder %s34, 0
      %p322 = por %p320, %p321
      %p323 = scmp.ne.s32.totalorder %s311, %s312
      %p324 = scmp.eq.s32.totalorder %s35, 1
      %p325 = por %p323, %p324
      %p327 = scmp.ne.s32.totalorder %s312, %s326
      %p328 = scmp.eq.s32.totalorder %s35, 0
      %p329 = por %p327, %p328
      %s331 = sadd.s32 %s330, 1
      %p334 = scmp.eq.s32.totalorder %s29, 1
      %p335 = scmp.ne.s32.totalorder %s330, %s332
      %p336 = scmp.eq.s32.totalorder %s29, 0
      %p337 = por %p335, %p336
      %p338 = scmp.ne.s32.totalorder %s330, %s332
      %p339 = scmp.eq.s32.totalorder %s34, 1
      %p340 = por %p338, %p339
      %p341 = scmp.ne.s32.totalorder %s332, %s333
      %p342 = scmp.eq.s32.totalorder %s34, 0
      %p343 = por %p341, %p342
      %p344 = scmp.ne.s32.totalorder %s332, %s333
      %p345 = scmp.eq.s32.totalorder %s35, 1
      %p346 = por %p344, %p345
      %p348 = scmp.ne.s32.totalorder %s333, %s347
      %p349 = scmp.eq.s32.totalorder %s35, 0
      %p350 = por %p348, %p349
      %s352 = sadd.s32 %s351, 1
      %p355 = scmp.eq.s32.totalorder %s29, 1
      %p356 = scmp.ne.s32.totalorder %s351, %s353
      %p357 = scmp.eq.s32.totalorder %s29, 0
      %p358 = por %p356, %p357
      %p359 = scmp.ne.s32.totalorder %s351, %s353
      %p360 = scmp.eq.s32.totalorder %s34, 1
      %p361 = por %p359, %p360
      %p362 = scmp.ne.s32.totalorder %s353, %s354
      %p363 = scmp.eq.s32.totalorder %s34, 0
      %p364 = por %p362, %p363
      %p365 = scmp.ne.s32.totalorder %s353, %s354
      %p366 = scmp.eq.s32.totalorder %s35, 1
      %p367 = por %p365, %p366
      %p369 = scmp.ne.s32.totalorder %s354, %s368
      %p370 = scmp.eq.s32.totalorder %s35, 0
      %p371 = por %p369, %p370
      %s373 = sadd.s32 %s372, 1
      %p376 = scmp.eq.s32.totalorder %s29, 1
      %p377 = scmp.ne.s32.totalorder %s372, %s374
      %p378 = scmp.eq.s32.totalorder %s29, 0
      %p379 = por %p377, %p378
      %p380 = scmp.ne.s32.totalorder %s372, %s374
      %p381 = scmp.eq.s32.totalorder %s34, 1
      %p382 = por %p380, %p381
      %p383 = scmp.ne.s32.totalorder %s374, %s375
      %p384 = scmp.eq.s32.totalorder %s34, 0
      %p385 = por %p383, %p384
      %p386 = scmp.ne.s32.totalorder %s374, %s375
      %p387 = scmp.eq.s32.totalorder %s35, 1
      %p388 = por %p386, %p387
      %p390 = scmp.ne.s32.totalorder %s375, %s389
      %p391 = scmp.eq.s32.totalorder %s35, 0
      %p392 = por %p390, %p391
      %s394 = sadd.s32 %s393, 1
      %p397 = scmp.eq.s32.totalorder %s29, 1
      %p398 = scmp.ne.s32.totalorder %s393, %s395
      %p399 = scmp.eq.s32.totalorder %s29, 0
      %p400 = por %p398, %p399
      %p401 = scmp.ne.s32.totalorder %s393, %s395
      %p402 = scmp.eq.s32.totalorder %s34, 1
      %p403 = por %p401, %p402
      %p404 = scmp.ne.s32.totalorder %s395, %s396
      %p405 = scmp.eq.s32.totalorder %s34, 0
      %p406 = por %p404, %p405
      %p407 = scmp.ne.s32.totalorder %s395, %s396
      %p408 = scmp.eq.s32.totalorder %s35, 1
      %p409 = por %p407, %p408
      %p411 = scmp.ne.s32.totalorder %s396, %s410
      %p412 = scmp.eq.s32.totalorder %s35, 0
      %p413 = por %p411, %p412
      %s414 = ssub.s32 %s29, %s36
      %p415 = scmp.eq.s32.totalorder %s414, 0
      %s417 = sadd.s32 %s416, 1
      %s418 = scalar_select %p415, %s416, %s417
      %p421 = pneg %p415
      %p422 = scmp.eq.s32.totalorder %s29, 1
      %p423 = por %p421, %p422
      %p424 = scmp.ne.s32.totalorder %s416, %s419
      %p425 = scmp.eq.s32.totalorder %s29, 0
      %p426 = por %p424, %p425
      %p427 = scmp.ne.s32.totalorder %s416, %s419
      %p428 = scmp.eq.s32.totalorder %s34, 1
      %p429 = por %p427, %p428
      %p430 = scmp.ne.s32.totalorder %s419, %s420
      %p431 = scmp.eq.s32.totalorder %s34, 0
      %p432 = por %p430, %p431
      %p433 = scmp.ne.s32.totalorder %s419, %s420
      %p434 = scmp.eq.s32.totalorder %s35, 1
      %p435 = por %p433, %p434
      %p437 = scmp.ne.s32.totalorder %s420, %s436
      %p438 = scmp.eq.s32.totalorder %s35, 0
      %p439 = por %p437, %p438
      %s440 = ssub.s32 %s29, %s36
      %p441 = scmp.eq.s32.totalorder %s440, 0
      %s443 = sadd.s32 %s442, 1
      %s444 = scalar_select %p441, %s442, %s443
      %p447 = pneg %p441
      %p448 = scmp.eq.s32.totalorder %s29, 1
      %p449 = por %p447, %p448
      %p450 = scmp.ne.s32.totalorder %s442, %s445
      %p451 = scmp.eq.s32.totalorder %s29, 0
      %p452 = por %p450, %p451
      %p453 = scmp.ne.s32.totalorder %s442, %s445
      %p454 = scmp.eq.s32.totalorder %s34, 1
      %p455 = por %p453, %p454
      %p456 = scmp.ne.s32.totalorder %s445, %s446
      %p457 = scmp.eq.s32.totalorder %s34, 0
      %p458 = por %p456, %p457
      %p459 = scmp.ne.s32.totalorder %s445, %s446
      %p460 = scmp.eq.s32.totalorder %s35, 1
      %p461 = por %p459, %p460
      %p463 = scmp.ne.s32.totalorder %s446, %s462
      %p464 = scmp.eq.s32.totalorder %s35, 0
      %p465 = por %p463, %p464
      %p466 = scmp.le.s32.totalorder 1, %s29
      %p467 = scmp.lt.s32.totalorder %s29, 3
      %p468 = pnand %p466, %p467
      %p469 = pneg %p468
      // Predicated region
      $region9: #{tpu_custom_call.1} parent=5 // pred_check
        _
      $region10: #{tpu_custom_call.1} parent=5 // pred_check_branch
        %471 = sbr.rel (%p468) target = $region12
      $region11: #{tpu_custom_call.1} parent=5 // pred_region
        %s472 = ssub.s32 %s29, 1
        // Predicated region
        $region13: #{tpu_custom_call.1} parent=11 // pred_check
          %p473 = pneg %p154
        $region14: #{tpu_custom_call.1} parent=11 // pred_check_branch
          %475 = sbr.rel (%p473) target = $region16
        $region15: #{tpu_custom_call.1} parent=11 // pred_region
          _
        $region16: #{tpu_custom_call.1} parent=11 // pred_fallthru
          _
        // Predicated region
        $region17: #{tpu_custom_call.1} parent=11 // pred_check
          %p476 = pneg %p175
        $region18: #{tpu_custom_call.1} parent=11 // pred_check_branch
          %478 = sbr.rel (%p476) target = $region20
        $region19: #{tpu_custom_call.1} parent=11 // pred_region
          _
        $region20: #{tpu_custom_call.1} parent=11 // pred_fallthru
          _
        // Predicated region
        $region21: #{tpu_custom_call.1} parent=11 // pred_check
          %p479 = pneg %p196
        $region22: #{tpu_custom_call.1} parent=11 // pred_check_branch
          %481 = sbr.rel (%p479) target = $region24
        $region23: #{tpu_custom_call.1} parent=11 // pred_region
          _
        $region24: #{tpu_custom_call.1} parent=11 // pred_fallthru
          _
        // Predicated region
        $region25: #{tpu_custom_call.1} parent=11 // pred_check
          %p482 = pneg %p217
        $region26: #{tpu_custom_call.1} parent=11 // pred_check_branch
          %484 = sbr.rel (%p482) target = $region28
        $region27: #{tpu_custom_call.1} parent=11 // pred_region
          %s486 = ssub.s32 16384, 16384
          %487 = vsyncadd [#allocation5], %s486
          %s488 = sshll.u32 [#allocation4], 4
          %s489 = int_to_ptr.vmem [resolvable:$true] %s488
          %494 = dma.hbm_to_vmem [thread:$0]  %s7, 16384, %s489, [#allocation5], 256, 256, 16
        $region28: #{tpu_custom_call.1} parent=11 // pred_fallthru
          _
        // Predicated region
        $region29: #{tpu_custom_call.1} parent=11 // pred_check
          %p495 = pneg %p238
        $region30: #{tpu_custom_call.1} parent=11 // pred_check_branch
          %497 = sbr.rel (%p495) target = $region32
        $region31: #{tpu_custom_call.1} parent=11 // pred_region
          _
        $region32: #{tpu_custom_call.1} parent=11 // pred_fallthru
          _
        // Predicated region
        $region33: #{tpu_custom_call.1} parent=11 // pred_check
          %p498 = pneg %p259
        $region34: #{tpu_custom_call.1} parent=11 // pred_check_branch
          %500 = sbr.rel (%p498) target = $region36
        $region35: #{tpu_custom_call.1} parent=11 // pred_region
          _
        $region36: #{tpu_custom_call.1} parent=11 // pred_fallthru
          _
        // Predicated region
        $region37: #{tpu_custom_call.1} parent=11 // pred_check
          %p501 = pneg %p280
        $region38: #{tpu_custom_call.1} parent=11 // pred_check_branch
          %503 = sbr.rel (%p501) target = $region40
        $region39: #{tpu_custom_call.1} parent=11 // pred_region
          _
        $region40: #{tpu_custom_call.1} parent=11 // pred_fallthru
          _
        // Predicated region
        $region41: #{tpu_custom_call.1} parent=11 // pred_check
          %p504 = pneg %p301
        $region42: #{tpu_custom_call.1} parent=11 // pred_check_branch
          %506 = sbr.rel (%p504) target = $region44
        $region43: #{tpu_custom_call.1} parent=11 // pred_region
          _
        $region44: #{tpu_custom_call.1} parent=11 // pred_fallthru
          _
        // Predicated region
        $region45: #{tpu_custom_call.1} parent=11 // pred_check
          %p507 = pneg %p322
        $region46: #{tpu_custom_call.1} parent=11 // pred_check_branch
          %509 = sbr.rel (%p507) target = $region48
        $region47: #{tpu_custom_call.1} parent=11 // pred_region
          _
        $region48: #{tpu_custom_call.1} parent=11 // pred_fallthru
          _
        // Predicated region
        $region49: #{tpu_custom_call.1} parent=11 // pred_check
          %p510 = pneg %p343
        $region50: #{tpu_custom_call.1} parent=11 // pred_check_branch
          %512 = sbr.rel (%p510) target = $region52
        $region51: #{tpu_custom_call.1} parent=11 // pred_region
          _
        $region52: #{tpu_custom_call.1} parent=11 // pred_fallthru
          _
        // Predicated region
        $region53: #{tpu_custom_call.1} parent=11 // pred_check
          %p513 = pneg %p364
        $region54: #{tpu_custom_call.1} parent=11 // pred_check_branch
          %515 = sbr.rel (%p513) target = $region56
        $region55: #{tpu_custom_call.1} parent=11 // pred_region
          _
        $region56: #{tpu_custom_call.1} parent=11 // pred_fallthru
          _
        // Predicated region
        $region57: #{tpu_custom_call.1} parent=11 // pred_check
          %p516 = pneg %p385
        $region58: #{tpu_custom_call.1} parent=11 // pred_check_branch
          %518 = sbr.rel (%p516) target = $region60
        $region59: #{tpu_custom_call.1} parent=11 // pred_region
          _
        $region60: #{tpu_custom_call.1} parent=11 // pred_fallthru
          _
        // Predicated region
        $region61: #{tpu_custom_call.1} parent=11 // pred_check
          %p519 = pneg %p406
        $region62: #{tpu_custom_call.1} parent=11 // pred_check_branch
          %521 = sbr.rel (%p519) target = $region64
        $region63: #{tpu_custom_call.1} parent=11 // pred_region
          _
        $region64: #{tpu_custom_call.1} parent=11 // pred_fallthru
          _
      $region12: #{tpu_custom_call.1} parent=5 // pred_fallthru
        _
      %p522 = scmp.lt.s32.totalorder %s29, 2
      // Predicated region
      $region65: #{tpu_custom_call.1} parent=5 // pred_check
        %p523 = pneg %p522
      $region66: #{tpu_custom_call.1} parent=5 // pred_check_branch
        %525 = sbr.rel (%p523) target = $region68
      $region67: #{tpu_custom_call.1} parent=5 // pred_region
        // Predicated region
        $region69: #{tpu_custom_call.1} parent=67 // pred_check
          %p526 = pneg %p49
        $region70: #{tpu_custom_call.1} parent=67 // pred_check_branch
          %528 = sbr.rel (%p526) target = $region72
        $region71: #{tpu_custom_call.1} parent=67 // pred_region
          %p529 = scmp.lt.s32.totalorder %s29, 1
          %s530 = scalar_select %p529, %s29, 1
          %s531 = smul.addr %s530, 8
          %s532 = scalar_lea.vmem %s0, %s531
        $region72: #{tpu_custom_call.1} parent=67 // pred_fallthru
          _
        // Predicated region
        $region73: #{tpu_custom_call.1} parent=67 // pred_check
          %p533 = pneg %p75
        $region74: #{tpu_custom_call.1} parent=67 // pred_check_branch
          %535 = sbr.rel (%p533) target = $region76
        $region75: #{tpu_custom_call.1} parent=67 // pred_region
          %p536 = scmp.lt.s32.totalorder %s29, 1
          %s537 = scalar_select %p536, %s29, 1
          %s538 = smul.addr %s537, 8
          %s539 = scalar_lea.vmem %s1, %s538
        $region76: #{tpu_custom_call.1} parent=67 // pred_fallthru
          _
        // Predicated region
        $region77: #{tpu_custom_call.1} parent=67 // pred_check
          %p540 = pneg %p101
        $region78: #{tpu_custom_call.1} parent=67 // pred_check_branch
          %542 = sbr.rel (%p540) target = $region80
        $region79: #{tpu_custom_call.1} parent=67 // pred_region
          %p543 = scmp.lt.s32.totalorder %s29, 1
          %s544 = scalar_select %p543, %s29, 1
          %s545 = smul.addr %s544, 8
          %s546 = scalar_lea.vmem %s2, %s545
        $region80: #{tpu_custom_call.1} parent=67 // pred_fallthru
          _
        // Predicated region
        $region81: #{tpu_custom_call.1} parent=67 // pred_check
          %p547 = pneg %p127
        $region82: #{tpu_custom_call.1} parent=67 // pred_check_branch
          %549 = sbr.rel (%p547) target = $region84
        $region83: #{tpu_custom_call.1} parent=67 // pred_region
          %p550 = scmp.lt.s32.totalorder %s29, 1
          %s551 = scalar_select %p550, %s29, 1
          %s552 = scalar_lea.vmem %s3, %s551
        $region84: #{tpu_custom_call.1} parent=67 // pred_fallthru
          _
      $region68: #{tpu_custom_call.1} parent=5 // pred_fallthru
        _
      %p553 = scmp.le.s32.totalorder 1, %s29
      %p554 = scmp.lt.s32.totalorder %s29, 3
      %p555 = pnand %p553, %p554
      %p556 = pneg %p555
      // Predicated region
      $region85: #{tpu_custom_call.1} parent=5 // pred_check
        _
      $region86: #{tpu_custom_call.1} parent=5 // pred_check_branch
        %558 = sbr.rel (%p555) target = $region88
      $region87: #{tpu_custom_call.1} parent=5 // pred_region
        %s559 = ssub.s32 %s29, 1
        // Predicated region
        $region89: #{tpu_custom_call.1} parent=87 // pred_check
          %p560 = pneg %p217
        $region90: #{tpu_custom_call.1} parent=87 // pred_check_branch
          %562 = sbr.rel (%p560) target = $region92
        $region91: #{tpu_custom_call.1} parent=87 // pred_region
          %563 = dma.done [#allocation5], 16384
        $region92: #{tpu_custom_call.1} parent=87 // pred_fallthru
          _
        %p564 = scmp.lt.s32.totalorder %s34, 1
        %s565 = scalar_select %p564, %s34, 1
        %s566 = smul.addr %s565, 8
        %s567 = scalar_lea.vmem %s0, %s566
        %p568 = pneg %p55
        %p569 = pneg %p52
        %p570 = scmp.lt.s32.totalorder %s34, 1
        %s571 = scalar_select %p570, %s34, 1
        %s572 = smul.addr %s571, 8
        %s573 = scalar_lea.vmem %s1, %s572
        %p574 = pneg %p81
        %p575 = pneg %p78
        %p576 = scmp.lt.s32.totalorder %s34, 1
        %s577 = scalar_select %p576, %s34, 1
        %s578 = smul.addr %s577, 8
        %s579 = scalar_lea.vmem %s2, %s578
        %p580 = pneg %p107
        %p581 = pneg %p104
        %p582 = scmp.lt.s32.totalorder %s34, 1
        %s583 = scalar_select %p582, %s34, 1
        %s584 = scalar_lea.vmem %s3, %s583
        %p585 = pneg %p133
        %p586 = pneg %p130
        %p587 = pneg %p154
        %p588 = pneg %p151
        %p589 = pneg %p175
        %p590 = pneg %p172
        %p591 = pneg %p196
        %p592 = pneg %p193
        %p593 = pneg %p217
        %p594 = pneg %p214
        %p595 = pneg %p238
        %p596 = pneg %p235
        %p597 = pneg %p259
        %p598 = pneg %p256
        %p599 = pneg %p280
        %p600 = pneg %p277
        %p601 = pneg %p301
        %p602 = pneg %p298
        %p603 = pneg %p322
        %p604 = pneg %p319
        %p605 = pneg %p343
        %p606 = pneg %p340
        %p607 = pneg %p364
        %p608 = pneg %p361
        %p609 = pneg %p385
        %p610 = pneg %p382
        %p611 = pneg %p406
        %p612 = pneg %p403
        %p613 = pneg %p432
        %p614 = pneg %p429
        %s615 = sand.u32 %s419, 1
        %s616 = scalar_lea.sflag [#allocation6], %s615
        %s617 = sand.u32 %s419, 1
        %s618 = scalar_lea.vmem [#allocation7], %s617
        %p619 = pneg %p458
        %p620 = pneg %p455
        %p621 = scmp.lt.s32.totalorder %s34, 1
        %s622 = scalar_select %p621, %s34, 1
        %s623 = scalar_lea.vmem %s18, %s622
        %p624 = scmp.lt.s32.totalorder %s34, 1
        %s625 = scalar_select %p624, %s34, 1
        %s626 = smul.addr %s625, 8
        %s627 = scalar_lea.vmem %s0, %s626
        %p628 = scmp.lt.s32.totalorder %s34, 1
        %s629 = scalar_select %p628, %s34, 1
        %s630 = smul.addr %s629, 8
        %s631 = scalar_lea.vmem %s1, %s630
        %p632 = scmp.lt.s32.totalorder %s34, 1
        %s633 = scalar_select %p632, %s34, 1
        %s634 = smul.addr %s633, 8
        %s635 = scalar_lea.vmem %s2, %s634
        %p636 = scmp.lt.s32.totalorder %s34, 1
        %s637 = scalar_select %p636, %s34, 1
        %s638 = scalar_lea.vmem %s3, %s637
        %p639 = scmp.lt.s32.totalorder %s34, 1
        %s640 = scalar_select %p639, %s34, 1
        %s641 = scalar_lea.vmem %s18, %s640
        %v642 = vld [vmem:[%s627] sm:$0xff]
        %v643 = vlaneseq
        %v644 = vand.u32 %v643, 127
        %645 = vset.pattern.permute.xlu0 0
        %646 = vperm.xlu0 %645, %v642
        %v647 = vpop.permute.xlu0 %646
        %vm648 = vcmp.eq.s32.totalorder %v647, %v644
        %v649 = vsel %vm648, 1, 0
        %v650 = vcvt.s32.f32 %v649
        %v651 = vld [vmem:[%s631] sm:$0xff]
        %v652 = vld [vmem:[%s4] sm:$0xff]
        %v653 = vld [vmem:[%s4 + $0x8] sm:$0xff]
        %v654 = vld [vmem:[%s4 + $0x10] sm:$0xff]
        %v655 = vld [vmem:[%s4 + $0x18] sm:$0xff]
        %v656 = vld [vmem:[%s4 + $0x20] sm:$0xff]
        %v657 = vld [vmem:[%s4 + $0x28] sm:$0xff]
        %v658 = vld [vmem:[%s4 + $0x30] sm:$0x3]
        %v659 = vld [vmem:[%s5] sm:$0x1]
        %661 = vset.pattern.permute.xlu0 0
        %662 = vperm.xlu0 %661, %v651
        %v663 = vpop.permute.xlu0 %662
        %v666 = vlaneseq
        %v667 = vshrl.u32 %v666, 7
        %v668 = vsub.s32 0, %v667
        %v669 = vrot.slane %v659, %v668
        %v671 = vmul.f32 %v663, %v669
        %vm672 = vcmask 408576
        %v674 = vsel %vm672, %v650, 0
        %vm676 = vcmask 1041408
        %v678 = vsel %vm676, %v658, 0
        %680 = vmatprep.subr.mxu0 0.0
        %681 = vmatpush1.msra.mxu0 %v652
        %682 = vmatprep.subr.mxu0 0.0
        %683 = vmatpush1.msra.mxu0 %v653
        %684 = vmatprep.subr.mxu0 0.0
        %685 = vmatpush1.msra.mxu0 %v654
        %686 = vmatprep.subr.mxu0 0.0
        %687 = vmatpush1.msra.mxu0 %v655
        %688 = vmatprep.subr.mxu0 0.0
        %689 = vmatpush1.msra.mxu0 %v656
        %690 = vmatprep.subr.mxu0 0.0
        %691 = vmatpush1.msra.mxu0 %v657
        %692 = vmatprep.subr.mxu0 0.0
        %693 = vmatpush1.msra.mxu0 %v678
        %694 = vmatprep.subr.mxu0 0.0
        %695 = vmatpush1.msra.mxu0 0.0
        %696 = vmatprep.subr.mxu0 0.0
        %697 = vmatpush1.msra.mxu0 0.0
        %698 = vmatprep.subr.mxu0 0.0
        %699 = vmatpush1.msra.mxu0 0.0
        %700 = vmatprep.subr.mxu0 0.0
        %701 = vmatpush1.msra.mxu0 0.0
        %702 = vmatprep.subr.mxu0 0.0
        %703 = vmatpush1.msra.mxu0 0.0
        %704 = vmatprep.subr.mxu0 0.0
        %705 = vmatpush1.msra.mxu0 0.0
        %706 = vmatprep.subr.mxu0 0.0
        %707 = vmatpush1.msra.mxu0 0.0
        %708 = vmatprep.subr.mxu0 0.0
        %709 = vmatpush1.msra.mxu0 0.0
        %710 = vmatprep.subr.mxu0 0.0
        %711 = vmatpush1.msra.mxu0 0.0
        %712 = vmatprep.subr.mxu0 0.0
        %713 = vmatpush1.msra.mxu0 0.0
        %714 = vmatprep.subr.mxu0 0.0
        %715 = vmatpush1.msra.mxu0 0.0
        %716 = vmatprep.subr.mxu0 0.0
        %717 = vmatpush1.msra.mxu0 0.0
        %718 = vmatprep.subr.mxu0 0.0
        %719 = vmatpush1.msra.mxu0 0.0
        %720 = vmatprep.subr.mxu0 0.0
        %721 = vmatpush1.msra.mxu0 0.0
        %722 = vmatprep.subr.mxu0 0.0
        %723 = vmatpush1.msra.mxu0 0.0
        %724 = vmatprep.subr.mxu0 0.0
        %725 = vmatpush1.msra.mxu0 0.0
        %726 = vmatprep.subr.mxu0 0.0
        %727 = vmatpush1.msra.mxu0 0.0
        %728 = vmatprep.subr.mxu0 0.0
        %729 = vmatpush1.msra.mxu0 0.0
        %730 = vmatprep.subr.mxu0 0.0
        %731 = vmatpush1.msra.mxu0 0.0
        %732 = vmatprep.subr.mxu0 0.0
        %733 = vmatpush1.msra.mxu0 0.0
        %734 = vmatprep.subr.mxu0 0.0
        %735 = vmatpush1.msra.mxu0 0.0
        %736 = vmatprep.subr.mxu0 0.0
        %737 = vmatpush1.msra.mxu0 0.0
        %738 = vmatprep.subr.mxu0 0.0
        %739 = vmatpush1.msra.mxu0 0.0
        %740 = vmatprep.subr.mxu0 0.0
        %741 = vmatpush1.msra.mxu0 0.0
        %742 = vmatprep.subr.mxu0 0.0
        %743 = vmatpush1.msra.mxu0 0.0
        %744 = vmatprep.mubr.f32.mxu0 0.0
        %745 = vmatmul.mubr.f32.gmra.mrb[0].mxu0 %v674
        %v746 = vpop.f32.mrb[0].mxu0
        %v747 = vadd.f32 %v671, %v746
        %v748 = vpop.f32.mrb[0].mxu0
        %749 = vdwg.mxu0
        %v750 = vld [vmem:[%s6] sm:$0x1]
        %v752 = vlaneseq
        %v753 = vshrl.u32 %v752, 7
        %v754 = vsub.s32 0, %v753
        %v755 = vrot.slane %v750, %v754
        %v757 = vadd.f32 %v747, %v755
        %v758 = vlaneseq
        %vm759 = vcmp.ge.s32.totalorder %v758, 0
        %vm760 = vcmp.lt.s32.totalorder %v758, 32
        %vm761 = vmand %vm759, %vm760
        %762 = vst.msk [vmem:[#allocation2] sm:$0x1] %vm761, %v757
        %v765 = vunpack.c.l.s4 1966171168
        %v766 = vunpack.c.0.s8 %v765
        %v767 = vlaneseq
        %v768 = vshrl.u32 %v767, 7
        %v769 = vsub.s32 %v766, %v768
        %v770 = vrot.slane %v757, %v769
        %v771 = vcombine.high %v770, %v770
        %v773 = vunpack.c.l.s4 1966171168
        %v774 = vunpack.c.0.s8 %v773
        %v775 = vlaneseq
        %v776 = vshrl.u32 %v775, 7
        %v777 = vsub.s32 %v774, %v776
        %v778 = vrot.slane %v770, %v777
        %v780 = vunpack.c.l.s4 1966171168
        %v781 = vunpack.c.0.s8 %v780
        %v782 = vlaneseq
        %v783 = vshrl.u32 %v782, 7
        %v784 = vsub.s32 %v781, %v783
        %v785 = vrot.slane %v771, %v784
        %786 = vrot.lane.b32.xlu0 %v785, 32
        %v787 = vpop.permute.xlu0 %786
        %vm789 = vcmp.ge.s32.totalorder %v758, 32
        %vm790 = vcmp.lt.s32.totalorder %v758, 64
        %vm791 = vmand %vm789, %vm790
        %792 = vst.msk [vmem:[#allocation2] sm:$0x1] %vm791, %v787
        %v793 = vcombine.high %v778, %v778
        %794 = vrot.lane.b32.xlu0 %v793, 64
        %v795 = vpop.permute.xlu0 %794
        %vm797 = vcmp.ge.s32.totalorder %v758, 64
        %vm798 = vcmp.lt.s32.totalorder %v758, 96
        %vm799 = vmand %vm797, %vm798
        %800 = vst.msk [vmem:[#allocation2] sm:$0x1] %vm799, %v795
        %v801 = vcombine.high %v785, %v785
        %802 = vrot.lane.b32.xlu0 %v801, 96
        %v803 = vpop.permute.xlu0 %802
        %vm805 = vcmp.ge.s32.totalorder %v758, 96
        %vm806 = vcmp.lt.s32.totalorder %v758, 128
        %vm807 = vmand %vm805, %vm806
        %808 = vst.msk [vmem:[#allocation2] sm:$0x1] %vm807, %v803
        %v809 = vcombine.high %v757, %v757
        %v811 = vunpack.c.l.s4 1966171168
        %v812 = vunpack.c.0.s8 %v811
        %v813 = vlaneseq
        %v814 = vshrl.u32 %v813, 7
        %v815 = vsub.s32 %v812, %v814
        %v816 = vrot.slane %v809, %v815
        %v818 = vunpack.c.l.s4 1966171168
        %v819 = vunpack.c.0.s8 %v818
        %v820 = vlaneseq
        %v821 = vshrl.u32 %v820, 7
        %v822 = vsub.s32 %v819, %v821
        %v823 = vrot.slane %v816, %v822
        %825 = vst.msk [vmem:[#allocation2 + $0x1] sm:$0x1] %vm761, %v823
        %v826 = vcombine.high %v816, %v816
        %v828 = vunpack.c.l.s4 1966171168
        %v829 = vunpack.c.0.s8 %v828
        %v830 = vlaneseq
        %v831 = vshrl.u32 %v830, 7
        %v832 = vsub.s32 %v829, %v831
        %v833 = vrot.slane %v826, %v832
        %834 = vrot.lane.b32.xlu0 %v833, 32
        %v835 = vpop.permute.xlu0 %834
        %837 = vst.msk [vmem:[#allocation2 + $0x1] sm:$0x1] %vm791, %v835
        %v838 = vcombine.high %v823, %v823
        %839 = vrot.lane.b32.xlu0 %v838, 64
        %v840 = vpop.permute.xlu0 %839
        %842 = vst.msk [vmem:[#allocation2 + $0x1] sm:$0x1] %vm799, %v840
        %v843 = vcombine.high %v833, %v833
        %844 = vrot.lane.b32.xlu0 %v843, 96
        %v845 = vpop.permute.xlu0 %844
        %847 = vst.msk [vmem:[#allocation2 + $0x1] sm:$0x1] %vm807, %v845
        %v848 = vld [vmem:[#allocation2] sm:$0x3]
        %v849 = vld [vmem:[#allocation4] sm:$0xff]
        %v850 = vld [vmem:[#allocation4 + $0x8] sm:$0xff]
        %v851 = vld [vmem:[#allocation4 + $0x10] sm:$0xff]
        %v852 = vld [vmem:[#allocation4 + $0x18] sm:$0xff]
        %v853 = vld [vmem:[#allocation4 + $0x20] sm:$0xff]
        %v854 = vld [vmem:[#allocation4 + $0x28] sm:$0xff]
        %v855 = vld [vmem:[#allocation4 + $0x30] sm:$0xff]
        %v856 = vld [vmem:[#allocation4 + $0x38] sm:$0xff]
        %v857 = vld [vmem:[#allocation4 + $0x40] sm:$0xff]
        %v858 = vld [vmem:[#allocation4 + $0x48] sm:$0xff]
        %v859 = vld [vmem:[#allocation4 + $0x50] sm:$0xff]
        %v860 = vld [vmem:[#allocation4 + $0x58] sm:$0xff]
        %v861 = vld [vmem:[#allocation4 + $0x60] sm:$0xff]
        %v862 = vld [vmem:[#allocation4 + $0x68] sm:$0xff]
        %v863 = vld [vmem:[#allocation4 + $0x70] sm:$0xff]
        %v864 = vld [vmem:[#allocation4 + $0x78] sm:$0xff]
        %v865 = vld [vmem:[#allocation4 + $0x80] sm:$0xff]
        %v866 = vld [vmem:[#allocation4 + $0x88] sm:$0xff]
        %v867 = vld [vmem:[#allocation4 + $0x90] sm:$0xff]
        %v868 = vld [vmem:[#allocation4 + $0x98] sm:$0xff]
        %v869 = vld [vmem:[#allocation4 + $0xa0] sm:$0xff]
        %v870 = vld [vmem:[#allocation4 + $0xa8] sm:$0xff]
        %v871 = vld [vmem:[#allocation4 + $0xb0] sm:$0xff]
        %v872 = vld [vmem:[#allocation4 + $0xb8] sm:$0xff]
        %v873 = vld [vmem:[#allocation4 + $0xc0] sm:$0xff]
        %v874 = vld [vmem:[#allocation4 + $0xc8] sm:$0xff]
        %v875 = vld [vmem:[#allocation4 + $0xd0] sm:$0xff]
        %v876 = vld [vmem:[#allocation4 + $0xd8] sm:$0xff]
        %v877 = vld [vmem:[#allocation4 + $0xe0] sm:$0xff]
        %v878 = vld [vmem:[#allocation4 + $0xe8] sm:$0xff]
        %v879 = vld [vmem:[#allocation4 + $0xf0] sm:$0xff]
        %v880 = vld [vmem:[#allocation4 + $0xf8] sm:$0xff]
        %v881 = vld [vmem:[#allocation4 + $0x100] sm:$0xff]
        %v882 = vld [vmem:[#allocation4 + $0x108] sm:$0xff]
        %v883 = vld [vmem:[#allocation4 + $0x110] sm:$0xff]
        %v884 = vld [vmem:[#allocation4 + $0x118] sm:$0xff]
        %v885 = vld [vmem:[#allocation4 + $0x120] sm:$0xff]
        %v886 = vld [vmem:[#allocation4 + $0x128] sm:$0xff]
        %v887 = vld [vmem:[#allocation4 + $0x130] sm:$0xff]
        %v888 = vld [vmem:[#allocation4 + $0x138] sm:$0xff]
        %v889 = vld [vmem:[#allocation4 + $0x140] sm:$0xff]
        %v890 = vld [vmem:[#allocation4 + $0x148] sm:$0xff]
        %v891 = vld [vmem:[#allocation4 + $0x150] sm:$0xff]
        %v892 = vld [vmem:[#allocation4 + $0x158] sm:$0xff]
        %v893 = vld [vmem:[#allocation4 + $0x160] sm:$0xff]
        %v894 = vld [vmem:[#allocation4 + $0x168] sm:$0xff]
        %v895 = vld [vmem:[#allocation4 + $0x170] sm:$0xff]
        %v896 = vld [vmem:[#allocation4 + $0x178] sm:$0xff]
        %v897 = vld [vmem:[#allocation4 + $0x180] sm:$0xff]
        %v898 = vld [vmem:[#allocation4 + $0x188] sm:$0xff]
        %v899 = vld [vmem:[#allocation4 + $0x190] sm:$0xff]
        %v900 = vld [vmem:[#allocation4 + $0x198] sm:$0xff]
        %v901 = vld [vmem:[#allocation4 + $0x1a0] sm:$0xff]
        %v902 = vld [vmem:[#allocation4 + $0x1a8] sm:$0xff]
        %v903 = vld [vmem:[#allocation4 + $0x1b0] sm:$0xff]
        %v904 = vld [vmem:[#allocation4 + $0x1b8] sm:$0xff]
        %v905 = vld [vmem:[#allocation4 + $0x1c0] sm:$0xff]
        %v906 = vld [vmem:[#allocation4 + $0x1c8] sm:$0xff]
        %v907 = vld [vmem:[#allocation4 + $0x1d0] sm:$0xff]
        %v908 = vld [vmem:[#allocation4 + $0x1d8] sm:$0xff]
        %v909 = vld [vmem:[#allocation4 + $0x1e0] sm:$0xff]
        %v910 = vld [vmem:[#allocation4 + $0x1e8] sm:$0xff]
        %v911 = vld [vmem:[#allocation4 + $0x1f0] sm:$0xff]
        %v912 = vld [vmem:[#allocation4 + $0x1f8] sm:$0xff]
        %v913 = vld [vmem:[%s8] sm:$0x3]
        %v915 = vlaneseq
        %v916 = vshrl.u32 %v915, 7
        %v917 = vsub.s32 0, %v916
        %v918 = vrot.slane %v848, %v917
        %v919 = vlaneseq
        %v920 = vshrl.u32 %v919, 7
        %v921 = vsub.s32 1, %v920
        %v922 = vrot.slane %v848, %v921
        %v926 = vlaneseq
        %v927 = vshrl.u32 %v926, 7
        %v928 = vsub.s32 0, %v927
        %v929 = vrot.slane %v913, %v928
        %v930 = vlaneseq
        %v931 = vshrl.u32 %v930, 7
        %v932 = vsub.s32 1, %v931
        %v933 = vrot.slane %v913, %v932
        %936 = vmatprep.subr.mxu0 %v850
        %937 = vmatpush1.msra.mxu0 %v849
        %938 = vmatprep.subr.mxu0 %v852
        %939 = vmatpush1.msra.mxu0 %v851
        %940 = vmatprep.subr.mxu0 %v854
        %941 = vmatpush1.msra.mxu0 %v853
        %942 = vmatprep.subr.mxu0 %v856
        %943 = vmatpush1.msra.mxu0 %v855
        %944 = vmatprep.subr.mxu0 %v858
        %945 = vmatpush1.msra.mxu0 %v857
        %946 = vmatprep.subr.mxu0 %v860
        %947 = vmatpush1.msra.mxu0 %v859
        %948 = vmatprep.subr.mxu0 %v862
        %949 = vmatpush1.msra.mxu0 %v861
        %950 = vmatprep.subr.mxu0 %v864
        %951 = vmatpush1.msra.mxu0 %v863
        %952 = vmatprep.subr.mxu0 %v866
        %953 = vmatpush1.msra.mxu0 %v865
        %954 = vmatprep.subr.mxu0 %v868
        %955 = vmatpush1.msra.mxu0 %v867
        %956 = vmatprep.subr.mxu0 %v870
        %957 = vmatpush1.msra.mxu0 %v869
        %958 = vmatprep.subr.mxu0 %v872
        %959 = vmatpush1.msra.mxu0 %v871
        %960 = vmatprep.subr.mxu0 %v874
        %961 = vmatpush1.msra.mxu0 %v873
        %962 = vmatprep.subr.mxu0 %v876
        %963 = vmatpush1.msra.mxu0 %v875
        %964 = vmatprep.subr.mxu0 %v878
        %965 = vmatpush1.msra.mxu0 %v877
        %966 = vmatprep.subr.mxu0 %v880
        %967 = vmatpush1.msra.mxu0 %v879
        %968 = vmatprep.subr.mxu0 %v882
        %969 = vmatpush1.msra.mxu0 %v881
        %970 = vmatprep.subr.mxu0 %v884
        %971 = vmatpush1.msra.mxu0 %v883
        %972 = vmatprep.subr.mxu0 %v886
        %973 = vmatpush1.msra.mxu0 %v885
        %974 = vmatprep.subr.mxu0 %v888
        %975 = vmatpush1.msra.mxu0 %v887
        %976 = vmatprep.subr.mxu0 %v890
        %977 = vmatpush1.msra.mxu0 %v889
        %978 = vmatprep.subr.mxu0 %v892
        %979 = vmatpush1.msra.mxu0 %v891
        %980 = vmatprep.subr.mxu0 %v894
        %981 = vmatpush1.msra.mxu0 %v893
        %982 = vmatprep.subr.mxu0 %v896
        %983 = vmatpush1.msra.mxu0 %v895
        %984 = vmatprep.subr.mxu0 %v898
        %985 = vmatpush1.msra.mxu0 %v897
        %986 = vmatprep.subr.mxu0 %v900
        %987 = vmatpush1.msra.mxu0 %v899
        %988 = vmatprep.subr.mxu0 %v902
        %989 = vmatpush1.msra.mxu0 %v901
        %990 = vmatprep.subr.mxu0 %v904
        %991 = vmatpush1.msra.mxu0 %v903
        %992 = vmatprep.subr.mxu0 %v906
        %993 = vmatpush1.msra.mxu0 %v905
        %994 = vmatprep.subr.mxu0 %v908
        %995 = vmatpush1.msra.mxu0 %v907
        %996 = vmatprep.subr.mxu0 %v910
        %997 = vmatpush1.msra.mxu0 %v909
        %998 = vmatprep.subr.mxu0 %v912
        %999 = vmatpush1.msra.mxu0 %v911
        %1000 = vmatprep.mubr.f32.mxu0 %v922
        %1001 = vmatmul.mubr.f32.gmra.mrb[0].mxu0 %v918
        %v1002 = vpop.f32.mrb[0].mxu0
        %v1003 = vadd.f32 %v929, %v1002
        %v1004 = vpop.f32.mrb[0].mxu0
        %v1005 = vadd.f32 %v933, %v1004
        %1006 = vdwg.mxu0
        %v1009 = vcombine.low %v1003, %v1005
        %v1011 = vunpack.c.l.s4 1966171168
        %v1012 = vunpack.c.0.s8 %v1011
        %v1013 = vlaneseq
        %v1014 = vshrl.u32 %v1013, 7
        %v1015 = vsub.s32 %v1012, %v1014
        %v1016 = vrot.slane %v1009, %v1015
        %v1018 = vunpack.c.l.s4 1966171168
        %v1019 = vunpack.c.0.s8 %v1018
        %v1020 = vlaneseq
        %v1021 = vshrl.u32 %v1020, 7
        %v1022 = vsub.s32 %v1019, %v1021
        %v1023 = vrot.slane %v1016, %v1022
        %vm1025 = vcmp.lt.s32.totalorder %v758, 256
        %vm1026 = vmand %vm759, %vm1025
        %1027 = vst.msk [vmem:[#allocation2] sm:$0x3] %vm1026, %v1023
        %v1028 = vld [vmem:[#allocation2] sm:$0x1]
        %vm1029 = vcmask 253952
        %1030 = vst.msk [vmem:[#allocation3] sm:$0x1] %vm1029, %v1028
        %v1031 = vld [vmem:[#allocation2] sm:$0x1]
        %v1033 = vlaneseq
        %v1034 = vshrl.u32 %v1033, 7
        %v1035 = vsub.s32 0, %v1034
        %v1036 = vrot.slane %v1031, %v1035
        %1037 = vrot.lane.b32.xlu0 %v1036, 96
        %v1038 = vpop.permute.xlu0 %1037
        %1040 = vst.msk [vmem:[#allocation3 + $0x1] sm:$0x1] %vm1029, %v1038
        %v1041 = vld [vmem:[#allocation2] sm:$0x1]
        %v1043 = vlaneseq
        %v1044 = vshrl.u32 %v1043, 7
        %v1045 = vsub.s32 0, %v1044
        %v1046 = vrot.slane %v1041, %v1045
        %1047 = vrot.lane.b32.xlu0 %v1046, 64
        %v1048 = vpop.permute.xlu0 %1047
        %1050 = vst.msk [vmem:[#allocation3 + $0x2] sm:$0x1] %vm1029, %v1048
        %v1051 = vld [vmem:[#allocation2] sm:$0x1]
        %v1053 = vlaneseq
        %v1054 = vshrl.u32 %v1053, 7
        %v1055 = vsub.s32 0, %v1054
        %v1056 = vrot.slane %v1051, %v1055
        %1057 = vrot.lane.b32.xlu0 %v1056, 32
        %v1058 = vpop.permute.xlu0 %1057
        %1060 = vst.msk [vmem:[#allocation3 + $0x3] sm:$0x1] %vm1029, %v1058
        %v1061 = vld [vmem:[#allocation2 + $0x1] sm:$0x1]
        %1062 = vst.msk [vmem:[#allocation3 + $0x4] sm:$0x1] %vm1029, %v1061
        %v1063 = vld [vmem:[#allocation2 + $0x1] sm:$0x1]
        %v1065 = vlaneseq
        %v1066 = vshrl.u32 %v1065, 7
        %v1067 = vsub.s32 0, %v1066
        %v1068 = vrot.slane %v1063, %v1067
        %1069 = vrot.lane.b32.xlu0 %v1068, 96
        %v1070 = vpop.permute.xlu0 %1069
        %1072 = vst.msk [vmem:[#allocation3 + $0x5] sm:$0x1] %vm1029, %v1070
        %v1073 = vld [vmem:[#allocation2 + $0x1] sm:$0x1]
        %v1075 = vlaneseq
        %v1076 = vshrl.u32 %v1075, 7
        %v1077 = vsub.s32 0, %v1076
        %v1078 = vrot.slane %v1073, %v1077
        %1079 = vrot.lane.b32.xlu0 %v1078, 64
        %v1080 = vpop.permute.xlu0 %1079
        %1082 = vst.msk [vmem:[#allocation3 + $0x6] sm:$0x1] %vm1029, %v1080
        %v1083 = vld [vmem:[#allocation2 + $0x1] sm:$0x1]
        %v1085 = vlaneseq
        %v1086 = vshrl.u32 %v1085, 7
        %v1087 = vsub.s32 0, %v1086
        %v1088 = vrot.slane %v1083, %v1087
        %1089 = vrot.lane.b32.xlu0 %v1088, 32
        %v1090 = vpop.permute.xlu0 %1089
        %1092 = vst.msk [vmem:[#allocation3 + $0x7] sm:$0x1] %vm1029, %v1090
        %v1093 = vld [vmem:[#allocation3] sm:$0xff]
        %v1094 = vld [vmem:[%s9] sm:$0xff]
        %v1095 = vld [vmem:[%s9 + $0x8] sm:$0xff]
        %v1096 = vld [vmem:[%s9 + $0x10] sm:$0xff]
        %v1097 = vld [vmem:[%s9 + $0x18] sm:$0xff]
        %vm1098 = vcmask 261120
        %v1100 = vsel %vm1098, %v1093, 0
        %1102 = vmatprep.subr.mxu0 0.0
        %1103 = vmatpush1.msra.mxu0 %v1094
        %1104 = vmatprep.subr.mxu0 0.0
        %1105 = vmatpush1.msra.mxu0 %v1095
        %1106 = vmatprep.subr.mxu0 0.0
        %1107 = vmatpush1.msra.mxu0 %v1096
        %1108 = vmatprep.subr.mxu0 0.0
        %1109 = vmatpush1.msra.mxu0 %v1097
        %1110 = vmatprep.subr.mxu0 0.0
        %1111 = vmatpush1.msra.mxu0 0.0
        %1112 = vmatprep.subr.mxu0 0.0
        %1113 = vmatpush1.msra.mxu0 0.0
        %1114 = vmatprep.subr.mxu0 0.0
        %1115 = vmatpush1.msra.mxu0 0.0
        %1116 = vmatprep.subr.mxu0 0.0
        %1117 = vmatpush1.msra.mxu0 0.0
        %1118 = vmatprep.subr.mxu0 0.0
        %1119 = vmatpush1.msra.mxu0 0.0
        %1120 = vmatprep.subr.mxu0 0.0
        %1121 = vmatpush1.msra.mxu0 0.0
        %1122 = vmatprep.subr.mxu0 0.0
        %1123 = vmatpush1.msra.mxu0 0.0
        %1124 = vmatprep.subr.mxu0 0.0
        %1125 = vmatpush1.msra.mxu0 0.0
        %1126 = vmatprep.subr.mxu0 0.0
        %1127 = vmatpush1.msra.mxu0 0.0
        %1128 = vmatprep.subr.mxu0 0.0
        %1129 = vmatpush1.msra.mxu0 0.0
        %1130 = vmatprep.subr.mxu0 0.0
        %1131 = vmatpush1.msra.mxu0 0.0
        %1132 = vmatprep.subr.mxu0 0.0
        %1133 = vmatpush1.msra.mxu0 0.0
        %1134 = vmatprep.subr.mxu0 0.0
        %1135 = vmatpush1.msra.mxu0 0.0
        %1136 = vmatprep.subr.mxu0 0.0
        %1137 = vmatpush1.msra.mxu0 0.0
        %1138 = vmatprep.subr.mxu0 0.0
        %1139 = vmatpush1.msra.mxu0 0.0
        %1140 = vmatprep.subr.mxu0 0.0
        %1141 = vmatpush1.msra.mxu0 0.0
        %1142 = vmatprep.subr.mxu0 0.0
        %1143 = vmatpush1.msra.mxu0 0.0
        %1144 = vmatprep.subr.mxu0 0.0
        %1145 = vmatpush1.msra.mxu0 0.0
        %1146 = vmatprep.subr.mxu0 0.0
        %1147 = vmatpush1.msra.mxu0 0.0
        %1148 = vmatprep.subr.mxu0 0.0
        %1149 = vmatpush1.msra.mxu0 0.0
        %1150 = vmatprep.subr.mxu0 0.0
        %1151 = vmatpush1.msra.mxu0 0.0
        %1152 = vmatprep.subr.mxu0 0.0
        %1153 = vmatpush1.msra.mxu0 0.0
        %1154 = vmatprep.subr.mxu0 0.0
        %1155 = vmatpush1.msra.mxu0 0.0
        %1156 = vmatprep.subr.mxu0 0.0
        %1157 = vmatpush1.msra.mxu0 0.0
        %1158 = vmatprep.subr.mxu0 0.0
        %1159 = vmatpush1.msra.mxu0 0.0
        %1160 = vmatprep.subr.mxu0 0.0
        %1161 = vmatpush1.msra.mxu0 0.0
        %1162 = vmatprep.subr.mxu0 0.0
        %1163 = vmatpush1.msra.mxu0 0.0
        %1164 = vmatprep.subr.mxu0 0.0
        %1165 = vmatpush1.msra.mxu0 0.0
        %1166 = vmatprep.mubr.f32.mxu0 0.0
        %1167 = vmatmul.mubr.f32.gmra.mrb[0].mxu0 %v1100
        %v1168 = vpop.f32.mrb[0].mxu0
        %v1169 = vadd.f32 0.0, %v1168
        %v1170 = vpop.f32.mrb[0].mxu0
        %1171 = vdwg.mxu0
        %v1172 = vmax.f32 %v1169, 0.0
        %v1173 = vld [vmem:[%s10] sm:$0xff]
        %v1174 = vld [vmem:[%s10 + $0x8] sm:$0xff]
        %v1175 = vld [vmem:[%s10 + $0x10] sm:$0xff]
        %v1176 = vld [vmem:[%s10 + $0x18] sm:$0xff]
        %v1177 = vld [vmem:[%s10 + $0x20] sm:$0xff]
        %v1178 = vld [vmem:[%s10 + $0x28] sm:$0xff]
        %v1179 = vld [vmem:[%s10 + $0x30] sm:$0xff]
        %v1180 = vld [vmem:[%s10 + $0x38] sm:$0xff]
        %vm1181 = vcmask 523264
        %v1183 = vsel %vm1181, %v1172, 0
        %1185 = vmatprep.subr.mxu0 0.0
        %1186 = vmatpush1.msra.mxu0 %v1173
        %1187 = vmatprep.subr.mxu0 0.0
        %1188 = vmatpush1.msra.mxu0 %v1174
        %1189 = vmatprep.subr.mxu0 0.0
        %1190 = vmatpush1.msra.mxu0 %v1175
        %1191 = vmatprep.subr.mxu0 0.0
        %1192 = vmatpush1.msra.mxu0 %v1176
        %1193 = vmatprep.subr.mxu0 0.0
        %1194 = vmatpush1.msra.mxu0 %v1177
        %1195 = vmatprep.subr.mxu0 0.0
        %1196 = vmatpush1.msra.mxu0 %v1178
        %1197 = vmatprep.subr.mxu0 0.0
        %1198 = vmatpush1.msra.mxu0 %v1179
        %1199 = vmatprep.subr.mxu0 0.0
        %1200 = vmatpush1.msra.mxu0 %v1180
        %1201 = vmatprep.subr.mxu0 0.0
        %1202 = vmatpush1.msra.mxu0 0.0
        %1203 = vmatprep.subr.mxu0 0.0
        %1204 = vmatpush1.msra.mxu0 0.0
        %1205 = vmatprep.subr.mxu0 0.0
        %1206 = vmatpush1.msra.mxu0 0.0
        %1207 = vmatprep.subr.mxu0 0.0
        %1208 = vmatpush1.msra.mxu0 0.0
        %1209 = vmatprep.subr.mxu0 0.0
        %1210 = vmatpush1.msra.mxu0 0.0
        %1211 = vmatprep.subr.mxu0 0.0
        %1212 = vmatpush1.msra.mxu0 0.0
        %1213 = vmatprep.subr.mxu0 0.0
        %1214 = vmatpush1.msra.mxu0 0.0
        %1215 = vmatprep.subr.mxu0 0.0
        %1216 = vmatpush1.msra.mxu0 0.0
        %1217 = vmatprep.subr.mxu0 0.0
        %1218 = vmatpush1.msra.mxu0 0.0
        %1219 = vmatprep.subr.mxu0 0.0
        %1220 = vmatpush1.msra.mxu0 0.0
        %1221 = vmatprep.subr.mxu0 0.0
        %1222 = vmatpush1.msra.mxu0 0.0
        %1223 = vmatprep.subr.mxu0 0.0
        %1224 = vmatpush1.msra.mxu0 0.0
        %1225 = vmatprep.subr.mxu0 0.0
        %1226 = vmatpush1.msra.mxu0 0.0
        %1227 = vmatprep.subr.mxu0 0.0
        %1228 = vmatpush1.msra.mxu0 0.0
        %1229 = vmatprep.subr.mxu0 0.0
        %1230 = vmatpush1.msra.mxu0 0.0
        %1231 = vmatprep.subr.mxu0 0.0
        %1232 = vmatpush1.msra.mxu0 0.0
        %1233 = vmatprep.subr.mxu0 0.0
        %1234 = vmatpush1.msra.mxu0 0.0
        %1235 = vmatprep.subr.mxu0 0.0
        %1236 = vmatpush1.msra.mxu0 0.0
        %1237 = vmatprep.subr.mxu0 0.0
        %1238 = vmatpush1.msra.mxu0 0.0
        %1239 = vmatprep.subr.mxu0 0.0
        %1240 = vmatpush1.msra.mxu0 0.0
        %1241 = vmatprep.subr.mxu0 0.0
        %1242 = vmatpush1.msra.mxu0 0.0
        %1243 = vmatprep.subr.mxu0 0.0
        %1244 = vmatpush1.msra.mxu0 0.0
        %1245 = vmatprep.subr.mxu0 0.0
        %1246 = vmatpush1.msra.mxu0 0.0
        %1247 = vmatprep.subr.mxu0 0.0
        %1248 = vmatpush1.msra.mxu0 0.0
        %1249 = vmatprep.mubr.f32.mxu0 0.0
        %1250 = vmatmul.mubr.f32.gmra.mrb[0].mxu0 %v1183
        %v1251 = vpop.f32.mrb[0].mxu0
        %v1252 = vadd.f32 0.0, %v1251
        %v1253 = vpop.f32.mrb[0].mxu0
        %1254 = vdwg.mxu0
        %v1255 = vadd.f32 %v1093, %v1252
        %v1256 = vld [vmem:[%s11] sm:$0xff]
        %vm1257 = vcmask 64512
        %v1259 = vsel %vm1257, %v1256, 0
        %1261 = vmatprep.subr.mxu0 0.0
        %1262 = vmatpush1.msra.mxu0 %v1255
        %1263 = vmatprep.subr.mxu0 0.0
        %1264 = vmatpush1.msra.mxu0 0.0
        %1265 = vmatprep.subr.mxu0 0.0
        %1266 = vmatpush1.msra.mxu0 0.0
        %1267 = vmatprep.subr.mxu0 0.0
        %1268 = vmatpush1.msra.mxu0 0.0
        %1269 = vmatprep.subr.mxu0 0.0
        %1270 = vmatpush1.msra.mxu0 0.0
        %1271 = vmatprep.subr.mxu0 0.0
        %1272 = vmatpush1.msra.mxu0 0.0
        %1273 = vmatprep.subr.mxu0 0.0
        %1274 = vmatpush1.msra.mxu0 0.0
        %1275 = vmatprep.subr.mxu0 0.0
        %1276 = vmatpush1.msra.mxu0 0.0
        %1277 = vmatprep.subr.mxu0 0.0
        %1278 = vmatpush1.msra.mxu0 0.0
        %1279 = vmatprep.subr.mxu0 0.0
        %1280 = vmatpush1.msra.mxu0 0.0
        %1281 = vmatprep.subr.mxu0 0.0
        %1282 = vmatpush1.msra.mxu0 0.0
        %1283 = vmatprep.subr.mxu0 0.0
        %1284 = vmatpush1.msra.mxu0 0.0
        %1285 = vmatprep.subr.mxu0 0.0
        %1286 = vmatpush1.msra.mxu0 0.0
        %1287 = vmatprep.subr.mxu0 0.0
        %1288 = vmatpush1.msra.mxu0 0.0
        %1289 = vmatprep.subr.mxu0 0.0
        %1290 = vmatpush1.msra.mxu0 0.0
        %1291 = vmatprep.subr.mxu0 0.0
        %1292 = vmatpush1.msra.mxu0 0.0
        %1293 = vmatprep.subr.mxu0 0.0
        %1294 = vmatpush1.msra.mxu0 0.0
        %1295 = vmatprep.subr.mxu0 0.0
        %1296 = vmatpush1.msra.mxu0 0.0
        %1297 = vmatprep.subr.mxu0 0.0
        %1298 = vmatpush1.msra.mxu0 0.0
        %1299 = vmatprep.subr.mxu0 0.0
        %1300 = vmatpush1.msra.mxu0 0.0
        %1301 = vmatprep.subr.mxu0 0.0
        %1302 = vmatpush1.msra.mxu0 0.0
        %1303 = vmatprep.subr.mxu0 0.0
        %1304 = vmatpush1.msra.mxu0 0.0
        %1305 = vmatprep.subr.mxu0 0.0
        %1306 = vmatpush1.msra.mxu0 0.0
        %1307 = vmatprep.subr.mxu0 0.0
        %1308 = vmatpush1.msra.mxu0 0.0
        %1309 = vmatprep.subr.mxu0 0.0
        %1310 = vmatpush1.msra.mxu0 0.0
        %1311 = vmatprep.subr.mxu0 0.0
        %1312 = vmatpush1.msra.mxu0 0.0
        %1313 = vmatprep.subr.mxu0 0.0
        %1314 = vmatpush1.msra.mxu0 0.0
        %1315 = vmatprep.subr.mxu0 0.0
        %1316 = vmatpush1.msra.mxu0 0.0
        %1317 = vmatprep.subr.mxu0 0.0
        %1318 = vmatpush1.msra.mxu0 0.0
        %1319 = vmatprep.subr.mxu0 0.0
        %1320 = vmatpush1.msra.mxu0 0.0
        %1321 = vmatprep.subr.mxu0 0.0
        %1322 = vmatpush1.msra.mxu0 0.0
        %1323 = vmatprep.subr.mxu0 0.0
        %1324 = vmatpush1.msra.mxu0 0.0
        %1325 = vmatprep.mubr.f32.mxu0 0.0
        %1326 = vmatmul.mubr.f32.gmra.mrb[0].mxu0 %v1259
        %v1327 = vpop.f32.mrb[0].mxu0
        %v1328 = vadd.f32 0.0, %v1327
        %v1329 = vpop.f32.mrb[0].mxu0
        %1330 = vdwg.mxu0
        %v1331 = vsub.f32 %v1255, %v1328
        %1332 = vst.msk [vmem:[#allocation2] sm:$0x1] %vm761, %v1331
        %v1335 = vunpack.c.l.s4 1966171168
        %v1336 = vunpack.c.0.s8 %v1335
        %v1337 = vlaneseq
        %v1338 = vshrl.u32 %v1337, 7
        %v1339 = vsub.s32 %v1336, %v1338
        %v1340 = vrot.slane %v1331, %v1339
        %v1341 = vcombine.high %v1340, %v1340
        %v1343 = vunpack.c.l.s4 1966171168
        %v1344 = vunpack.c.0.s8 %v1343
        %v1345 = vlaneseq
        %v1346 = vshrl.u32 %v1345, 7
        %v1347 = vsub.s32 %v1344, %v1346
        %v1348 = vrot.slane %v1340, %v1347
        %v1350 = vunpack.c.l.s4 1966171168
        %v1351 = vunpack.c.0.s8 %v1350
        %v1352 = vlaneseq
        %v1353 = vshrl.u32 %v1352, 7
        %v1354 = vsub.s32 %v1351, %v1353
        %v1355 = vrot.slane %v1341, %v1354
        %1356 = vrot.lane.b32.xlu0 %v1355, 32
        %v1357 = vpop.permute.xlu0 %1356
        %1359 = vst.msk [vmem:[#allocation2] sm:$0x1] %vm791, %v1357
        %v1360 = vcombine.high %v1348, %v1348
        %1361 = vrot.lane.b32.xlu0 %v1360, 64
        %v1362 = vpop.permute.xlu0 %1361
        %1364 = vst.msk [vmem:[#allocation2] sm:$0x1] %vm799, %v1362
        %v1365 = vcombine.high %v1355, %v1355
        %1366 = vrot.lane.b32.xlu0 %v1365, 96
        %v1367 = vpop.permute.xlu0 %1366
        %1369 = vst.msk [vmem:[#allocation2] sm:$0x1] %vm807, %v1367
        %v1370 = vcombine.high %v1331, %v1331
        %v1372 = vunpack.c.l.s4 1966171168
        %v1373 = vunpack.c.0.s8 %v1372
        %v1374 = vlaneseq
        %v1375 = vshrl.u32 %v1374, 7
        %v1376 = vsub.s32 %v1373, %v1375
        %v1377 = vrot.slane %v1370, %v1376
        %v1379 = vunpack.c.l.s4 1966171168
        %v1380 = vunpack.c.0.s8 %v1379
        %v1381 = vlaneseq
        %v1382 = vshrl.u32 %v1381, 7
        %v1383 = vsub.s32 %v1380, %v1382
        %v1384 = vrot.slane %v1377, %v1383
        %1386 = vst.msk [vmem:[#allocation2 + $0x1] sm:$0x1] %vm761, %v1384
        %v1387 = vcombine.high %v1377, %v1377
        %v1389 = vunpack.c.l.s4 1966171168
        %v1390 = vunpack.c.0.s8 %v1389
        %v1391 = vlaneseq
        %v1392 = vshrl.u32 %v1391, 7
        %v1393 = vsub.s32 %v1390, %v1392
        %v1394 = vrot.slane %v1387, %v1393
        %1395 = vrot.lane.b32.xlu0 %v1394, 32
        %v1396 = vpop.permute.xlu0 %1395
        %1398 = vst.msk [vmem:[#allocation2 + $0x1] sm:$0x1] %vm791, %v1396
        %v1399 = vcombine.high %v1384, %v1384
        %1400 = vrot.lane.b32.xlu0 %v1399, 64
        %v1401 = vpop.permute.xlu0 %1400
        %1403 = vst.msk [vmem:[#allocation2 + $0x1] sm:$0x1] %vm799, %v1401
        %v1404 = vcombine.high %v1394, %v1394
        %1405 = vrot.lane.b32.xlu0 %v1404, 96
        %v1406 = vpop.permute.xlu0 %1405
        %1408 = vst.msk [vmem:[#allocation2 + $0x1] sm:$0x1] %vm807, %v1406
        %v1409 = vld [vmem:[#allocation2] sm:$0x3]
        %s1410 = scalar_lea.vmem [#allocation4], 512
        %v1411 = vld [vmem:[%s1410] sm:$0xff]
        %v1412 = vld [vmem:[%s1410 + $0x8] sm:$0xff]
        %v1413 = vld [vmem:[%s1410 + $0x10] sm:$0xff]
        %v1414 = vld [vmem:[%s1410 + $0x18] sm:$0xff]
        %v1415 = vld [vmem:[%s1410 + $0x20] sm:$0xff]
        %v1416 = vld [vmem:[%s1410 + $0x28] sm:$0xff]
        %v1417 = vld [vmem:[%s1410 + $0x30] sm:$0xff]
        %v1418 = vld [vmem:[%s1410 + $0x38] sm:$0xff]
        %v1419 = vld [vmem:[%s1410 + $0x40] sm:$0xff]
        %v1420 = vld [vmem:[%s1410 + $0x48] sm:$0xff]
        %v1421 = vld [vmem:[%s1410 + $0x50] sm:$0xff]
        %v1422 = vld [vmem:[%s1410 + $0x58] sm:$0xff]
        %v1423 = vld [vmem:[%s1410 + $0x60] sm:$0xff]
        %v1424 = vld [vmem:[%s1410 + $0x68] sm:$0xff]
        %v1425 = vld [vmem:[%s1410 + $0x70] sm:$0xff]
        %v1426 = vld [vmem:[%s1410 + $0x78] sm:$0xff]
        %v1427 = vld [vmem:[%s1410 + $0x80] sm:$0xff]
        %v1428 = vld [vmem:[%s1410 + $0x88] sm:$0xff]
        %v1429 = vld [vmem:[%s1410 + $0x90] sm:$0xff]
        %v1430 = vld [vmem:[%s1410 + $0x98] sm:$0xff]
        %v1431 = vld [vmem:[%s1410 + $0xa0] sm:$0xff]
        %v1432 = vld [vmem:[%s1410 + $0xa8] sm:$0xff]
        %v1433 = vld [vmem:[%s1410 + $0xb0] sm:$0xff]
        %v1434 = vld [vmem:[%s1410 + $0xb8] sm:$0xff]
        %v1435 = vld [vmem:[%s1410 + $0xc0] sm:$0xff]
        %v1436 = vld [vmem:[%s1410 + $0xc8] sm:$0xff]
        %v1437 = vld [vmem:[%s1410 + $0xd0] sm:$0xff]
        %v1438 = vld [vmem:[%s1410 + $0xd8] sm:$0xff]
        %v1439 = vld [vmem:[%s1410 + $0xe0] sm:$0xff]
        %v1440 = vld [vmem:[%s1410 + $0xe8] sm:$0xff]
        %v1441 = vld [vmem:[%s1410 + $0xf0] sm:$0xff]
        %v1442 = vld [vmem:[%s1410 + $0xf8] sm:$0xff]
        %v1443 = vld [vmem:[%s1410 + $0x100] sm:$0xff]
        %v1444 = vld [vmem:[%s1410 + $0x108] sm:$0xff]
        %v1445 = vld [vmem:[%s1410 + $0x110] sm:$0xff]
        %v1446 = vld [vmem:[%s1410 + $0x118] sm:$0xff]
        %v1447 = vld [vmem:[%s1410 + $0x120] sm:$0xff]
        %v1448 = vld [vmem:[%s1410 + $0x128] sm:$0xff]
        %v1449 = vld [vmem:[%s1410 + $0x130] sm:$0xff]
        %v1450 = vld [vmem:[%s1410 + $0x138] sm:$0xff]
        %v1451 = vld [vmem:[%s1410 + $0x140] sm:$0xff]
        %v1452 = vld [vmem:[%s1410 + $0x148] sm:$0xff]
        %v1453 = vld [vmem:[%s1410 + $0x150] sm:$0xff]
        %v1454 = vld [vmem:[%s1410 + $0x158] sm:$0xff]
        %v1455 = vld [vmem:[%s1410 + $0x160] sm:$0xff]
        %v1456 = vld [vmem:[%s1410 + $0x168] sm:$0xff]
        %v1457 = vld [vmem:[%s1410 + $0x170] sm:$0xff]
        %v1458 = vld [vmem:[%s1410 + $0x178] sm:$0xff]
        %v1459 = vld [vmem:[%s1410 + $0x180] sm:$0xff]
        %v1460 = vld [vmem:[%s1410 + $0x188] sm:$0xff]
        %v1461 = vld [vmem:[%s1410 + $0x190] sm:$0xff]
        %v1462 = vld [vmem:[%s1410 + $0x198] sm:$0xff]
        %v1463 = vld [vmem:[%s1410 + $0x1a0] sm:$0xff]
        %v1464 = vld [vmem:[%s1410 + $0x1a8] sm:$0xff]
        %v1465 = vld [vmem:[%s1410 + $0x1b0] sm:$0xff]
        %v1466 = vld [vmem:[%s1410 + $0x1b8] sm:$0xff]
        %v1467 = vld [vmem:[%s1410 + $0x1c0] sm:$0xff]
        %v1468 = vld [vmem:[%s1410 + $0x1c8] sm:$0xff]
        %v1469 = vld [vmem:[%s1410 + $0x1d0] sm:$0xff]
        %v1470 = vld [vmem:[%s1410 + $0x1d8] sm:$0xff]
        %v1471 = vld [vmem:[%s1410 + $0x1e0] sm:$0xff]
        %v1472 = vld [vmem:[%s1410 + $0x1e8] sm:$0xff]
        %v1473 = vld [vmem:[%s1410 + $0x1f0] sm:$0xff]
        %v1474 = vld [vmem:[%s1410 + $0x1f8] sm:$0xff]
        %s1475 = scalar_lea.vmem %s8, 2
        %v1476 = vld [vmem:[%s1475] sm:$0x3]
        %v1478 = vlaneseq
        %v1479 = vshrl.u32 %v1478, 7
        %v1480 = vsub.s32 0, %v1479
        %v1481 = vrot.slane %v1409, %v1480
        %v1482 = vlaneseq
        %v1483 = vshrl.u32 %v1482, 7
        %v1484 = vsub.s32 1, %v1483
        %v1485 = vrot.slane %v1409, %v1484
        %v1489 = vlaneseq
        %v1490 = vshrl.u32 %v1489, 7
        %v1491 = vsub.s32 0, %v1490
        %v1492 = vrot.slane %v1476, %v1491
        %v1493 = vlaneseq
        %v1494 = vshrl.u32 %v1493, 7
        %v1495 = vsub.s32 1, %v1494
        %v1496 = vrot.slane %v1476, %v1495
        %1499 = vmatprep.subr.mxu0 %v1412
        %1500 = vmatpush1.msra.mxu0 %v1411
        %1501 = vmatprep.subr.mxu0 %v1414
        %1502 = vmatpush1.msra.mxu0 %v1413
        %1503 = vmatprep.subr.mxu0 %v1416
        %1504 = vmatpush1.msra.mxu0 %v1415
        %1505 = vmatprep.subr.mxu0 %v1418
        %1506 = vmatpush1.msra.mxu0 %v1417
        %1507 = vmatprep.subr.mxu0 %v1420
        %1508 = vmatpush1.msra.mxu0 %v1419
        %1509 = vmatprep.subr.mxu0 %v1422
        %1510 = vmatpush1.msra.mxu0 %v1421
        %1511 = vmatprep.subr.mxu0 %v1424
        %1512 = vmatpush1.msra.mxu0 %v1423
        %1513 = vmatprep.subr.mxu0 %v1426
        %1514 = vmatpush1.msra.mxu0 %v1425
        %1515 = vmatprep.subr.mxu0 %v1428
        %1516 = vmatpush1.msra.mxu0 %v1427
        %1517 = vmatprep.subr.mxu0 %v1430
        %1518 = vmatpush1.msra.mxu0 %v1429
        %1519 = vmatprep.subr.mxu0 %v1432
        %1520 = vmatpush1.msra.mxu0 %v1431
        %1521 = vmatprep.subr.mxu0 %v1434
        %1522 = vmatpush1.msra.mxu0 %v1433
        %1523 = vmatprep.subr.mxu0 %v1436
        %1524 = vmatpush1.msra.mxu0 %v1435
        %1525 = vmatprep.subr.mxu0 %v1438
        %1526 = vmatpush1.msra.mxu0 %v1437
        %1527 = vmatprep.subr.mxu0 %v1440
        %1528 = vmatpush1.msra.mxu0 %v1439
        %1529 = vmatprep.subr.mxu0 %v1442
        %1530 = vmatpush1.msra.mxu0 %v1441
        %1531 = vmatprep.subr.mxu0 %v1444
        %1532 = vmatpush1.msra.mxu0 %v1443
        %1533 = vmatprep.subr.mxu0 %v1446
        %1534 = vmatpush1.msra.mxu0 %v1445
        %1535 = vmatprep.subr.mxu0 %v1448
        %1536 = vmatpush1.msra.mxu0 %v1447
        %1537 = vmatprep.subr.mxu0 %v1450
        %1538 = vmatpush1.msra.mxu0 %v1449
        %1539 = vmatprep.subr.mxu0 %v1452
        %1540 = vmatpush1.msra.mxu0 %v1451
        %1541 = vmatprep.subr.mxu0 %v1454
        %1542 = vmatpush1.msra.mxu0 %v1453
        %1543 = vmatprep.subr.mxu0 %v1456
        %1544 = vmatpush1.msra.mxu0 %v1455
        %1545 = vmatprep.subr.mxu0 %v1458
        %1546 = vmatpush1.msra.mxu0 %v1457
        %1547 = vmatprep.subr.mxu0 %v1460
        %1548 = vmatpush1.msra.mxu0 %v1459
        %1549 = vmatprep.subr.mxu0 %v1462
        %1550 = vmatpush1.msra.mxu0 %v1461
        %1551 = vmatprep.subr.mxu0 %v1464
        %1552 = vmatpush1.msra.mxu0 %v1463
        %1553 = vmatprep.subr.mxu0 %v1466
        %1554 = vmatpush1.msra.mxu0 %v1465
        %1555 = vmatprep.subr.mxu0 %v1468
        %1556 = vmatpush1.msra.mxu0 %v1467
        %1557 = vmatprep.subr.mxu0 %v1470
        %1558 = vmatpush1.msra.mxu0 %v1469
        %1559 = vmatprep.subr.mxu0 %v1472
        %1560 = vmatpush1.msra.mxu0 %v1471
        %1561 = vmatprep.subr.mxu0 %v1474
        %1562 = vmatpush1.msra.mxu0 %v1473
        %1563 = vmatprep.mubr.f32.mxu0 %v1485
        %1564 = vmatmul.mubr.f32.gmra.mrb[0].mxu0 %v1481
        %v1565 = vpop.f32.mrb[0].mxu0
        %v1566 = vadd.f32 %v1492, %v1565
        %v1567 = vpop.f32.mrb[0].mxu0
        %v1568 = vadd.f32 %v1496, %v1567
        %1569 = vdwg.mxu0
        %v1572 = vcombine.low %v1566, %v1568
        %v1574 = vunpack.c.l.s4 1966171168
        %v1575 = vunpack.c.0.s8 %v1574
        %v1576 = vlaneseq
        %v1577 = vshrl.u32 %v1576, 7
        %v1578 = vsub.s32 %v1575, %v1577
        %v1579 = vrot.slane %v1572, %v1578
        %v1581 = vunpack.c.l.s4 1966171168
        %v1582 = vunpack.c.0.s8 %v1581
        %v1583 = vlaneseq
        %v1584 = vshrl.u32 %v1583, 7
        %v1585 = vsub.s32 %v1582, %v1584
        %v1586 = vrot.slane %v1579, %v1585
        %1588 = vst.msk [vmem:[#allocation2] sm:$0x3] %vm1026, %v1586
        %v1589 = vld [vmem:[#allocation2] sm:$0x1]
        %1590 = vst.msk [vmem:[#allocation3] sm:$0x1] %vm1029, %v1589
        %v1591 = vld [vmem:[#allocation2] sm:$0x1]
        %v1593 = vlaneseq
        %v1594 = vshrl.u32 %v1593, 7
        %v1595 = vsub.s32 0, %v1594
        %v1596 = vrot.slane %v1591, %v1595
        %1597 = vrot.lane.b32.xlu0 %v1596, 96
        %v1598 = vpop.permute.xlu0 %1597
        %1600 = vst.msk [vmem:[#allocation3 + $0x1] sm:$0x1] %vm1029, %v1598
        %v1601 = vld [vmem:[#allocation2] sm:$0x1]
        %v1603 = vlaneseq
        %v1604 = vshrl.u32 %v1603, 7
        %v1605 = vsub.s32 0, %v1604
        %v1606 = vrot.slane %v1601, %v1605
        %1607 = vrot.lane.b32.xlu0 %v1606, 64
        %v1608 = vpop.permute.xlu0 %1607
        %1610 = vst.msk [vmem:[#allocation3 + $0x2] sm:$0x1] %vm1029, %v1608
        %v1611 = vld [vmem:[#allocation2] sm:$0x1]
        %v1613 = vlaneseq
        %v1614 = vshrl.u32 %v1613, 7
        %v1615 = vsub.s32 0, %v1614
        %v1616 = vrot.slane %v1611, %v1615
        %1617 = vrot.lane.b32.xlu0 %v1616, 32
        %v1618 = vpop.permute.xlu0 %1617
        %1620 = vst.msk [vmem:[#allocation3 + $0x3] sm:$0x1] %vm1029, %v1618
        %v1621 = vld [vmem:[#allocation2 + $0x1] sm:$0x1]
        %1622 = vst.msk [vmem:[#allocation3 + $0x4] sm:$0x1] %vm1029, %v1621
        %v1623 = vld [vmem:[#allocation2 + $0x1] sm:$0x1]
        %v1625 = vlaneseq
        %v1626 = vshrl.u32 %v1625, 7
        %v1627 = vsub.s32 0, %v1626
        %v1628 = vrot.slane %v1623, %v1627
        %1629 = vrot.lane.b32.xlu0 %v1628, 96
        %v1630 = vpop.permute.xlu0 %1629
        %1632 = vst.msk [vmem:[#allocation3 + $0x5] sm:$0x1] %vm1029, %v1630
        %v1633 = vld [vmem:[#allocation2 + $0x1] sm:$0x1]
        %v1635 = vlaneseq
        %v1636 = vshrl.u32 %v1635, 7
        %v1637 = vsub.s32 0, %v1636
        %v1638 = vrot.slane %v1633, %v1637
        %1639 = vrot.lane.b32.xlu0 %v1638, 64
        %v1640 = vpop.permute.xlu0 %1639
        %1642 = vst.msk [vmem:[#allocation3 + $0x6] sm:$0x1] %vm1029, %v1640
        %v1643 = vld [vmem:[#allocation2 + $0x1] sm:$0x1]
        %v1645 = vlaneseq
        %v1646 = vshrl.u32 %v1645, 7
        %v1647 = vsub.s32 0, %v1646
        %v1648 = vrot.slane %v1643, %v1647
        %1649 = vrot.lane.b32.xlu0 %v1648, 32
        %v1650 = vpop.permute.xlu0 %1649
        %1652 = vst.msk [vmem:[#allocation3 + $0x7] sm:$0x1] %vm1029, %v1650
        %v1653 = vld [vmem:[#allocation3] sm:$0xff]
        %s1654 = scalar_lea.vmem %s9, 32
        %v1655 = vld [vmem:[%s1654] sm:$0xff]
        %v1656 = vld [vmem:[%s1654 + $0x8] sm:$0xff]
        %v1657 = vld [vmem:[%s1654 + $0x10] sm:$0xff]
        %v1658 = vld [vmem:[%s1654 + $0x18] sm:$0xff]
        %v1660 = vsel %vm1098, %v1653, 0
        %1662 = vmatprep.subr.mxu0 0.0
        %1663 = vmatpush1.msra.mxu0 %v1655
        %1664 = vmatprep.subr.mxu0 0.0
        %1665 = vmatpush1.msra.mxu0 %v1656
        %1666 = vmatprep.subr.mxu0 0.0
        %1667 = vmatpush1.msra.mxu0 %v1657
        %1668 = vmatprep.subr.mxu0 0.0
        %1669 = vmatpush1.msra.mxu0 %v1658
        %1670 = vmatprep.subr.mxu0 0.0
        %1671 = vmatpush1.msra.mxu0 0.0
        %1672 = vmatprep.subr.mxu0 0.0
        %1673 = vmatpush1.msra.mxu0 0.0
        %1674 = vmatprep.subr.mxu0 0.0
        %1675 = vmatpush1.msra.mxu0 0.0
        %1676 = vmatprep.subr.mxu0 0.0
        %1677 = vmatpush1.msra.mxu0 0.0
        %1678 = vmatprep.subr.mxu0 0.0
        %1679 = vmatpush1.msra.mxu0 0.0
        %1680 = vmatprep.subr.mxu0 0.0
        %1681 = vmatpush1.msra.mxu0 0.0
        %1682 = vmatprep.subr.mxu0 0.0
        %1683 = vmatpush1.msra.mxu0 0.0
        %1684 = vmatprep.subr.mxu0 0.0
        %1685 = vmatpush1.msra.mxu0 0.0
        %1686 = vmatprep.subr.mxu0 0.0
        %1687 = vmatpush1.msra.mxu0 0.0
        %1688 = vmatprep.subr.mxu0 0.0
        %1689 = vmatpush1.msra.mxu0 0.0
        %1690 = vmatprep.subr.mxu0 0.0
        %1691 = vmatpush1.msra.mxu0 0.0
        %1692 = vmatprep.subr.mxu0 0.0
        %1693 = vmatpush1.msra.mxu0 0.0
        %1694 = vmatprep.subr.mxu0 0.0
        %1695 = vmatpush1.msra.mxu0 0.0
        %1696 = vmatprep.subr.mxu0 0.0
        %1697 = vmatpush1.msra.mxu0 0.0
        %1698 = vmatprep.subr.mxu0 0.0
        %1699 = vmatpush1.msra.mxu0 0.0
        %1700 = vmatprep.subr.mxu0 0.0
        %1701 = vmatpush1.msra.mxu0 0.0
        %1702 = vmatprep.subr.mxu0 0.0
        %1703 = vmatpush1.msra.mxu0 0.0
        %1704 = vmatprep.subr.mxu0 0.0
        %1705 = vmatpush1.msra.mxu0 0.0
        %1706 = vmatprep.subr.mxu0 0.0
        %1707 = vmatpush1.msra.mxu0 0.0
        %1708 = vmatprep.subr.mxu0 0.0
        %1709 = vmatpush1.msra.mxu0 0.0
        %1710 = vmatprep.subr.mxu0 0.0
        %1711 = vmatpush1.msra.mxu0 0.0
        %1712 = vmatprep.subr.mxu0 0.0
        %1713 = vmatpush1.msra.mxu0 0.0
        %1714 = vmatprep.subr.mxu0 0.0
        %1715 = vmatpush1.msra.mxu0 0.0
        %1716 = vmatprep.subr.mxu0 0.0
        %1717 = vmatpush1.msra.mxu0 0.0
        %1718 = vmatprep.subr.mxu0 0.0
        %1719 = vmatpush1.msra.mxu0 0.0
        %1720 = vmatprep.subr.mxu0 0.0
        %1721 = vmatpush1.msra.mxu0 0.0
        %1722 = vmatprep.subr.mxu0 0.0
        %1723 = vmatpush1.msra.mxu0 0.0
        %1724 = vmatprep.subr.mxu0 0.0
        %1725 = vmatpush1.msra.mxu0 0.0
        %1726 = vmatprep.mubr.f32.mxu0 0.0
        %1727 = vmatmul.mubr.f32.gmra.mrb[0].mxu0 %v1660
        %v1728 = vpop.f32.mrb[0].mxu0
        %v1729 = vadd.f32 0.0, %v1728
        %v1730 = vpop.f32.mrb[0].mxu0
        %1731 = vdwg.mxu0
        %v1732 = vmax.f32 %v1729, 0.0
        %s1733 = scalar_lea.vmem %s10, 64
        %v1734 = vld [vmem:[%s1733] sm:$0xff]
        %v1735 = vld [vmem:[%s1733 + $0x8] sm:$0xff]
        %v1736 = vld [vmem:[%s1733 + $0x10] sm:$0xff]
        %v1737 = vld [vmem:[%s1733 + $0x18] sm:$0xff]
        %v1738 = vld [vmem:[%s1733 + $0x20] sm:$0xff]
        %v1739 = vld [vmem:[%s1733 + $0x28] sm:$0xff]
        %v1740 = vld [vmem:[%s1733 + $0x30] sm:$0xff]
        %v1741 = vld [vmem:[%s1733 + $0x38] sm:$0xff]
        %v1743 = vsel %vm1181, %v1732, 0
        %1745 = vmatprep.subr.mxu0 0.0
        %1746 = vmatpush1.msra.mxu0 %v1734
        %1747 = vmatprep.subr.mxu0 0.0
        %1748 = vmatpush1.msra.mxu0 %v1735
        %1749 = vmatprep.subr.mxu0 0.0
        %1750 = vmatpush1.msra.mxu0 %v1736
        %1751 = vmatprep.subr.mxu0 0.0
        %1752 = vmatpush1.msra.mxu0 %v1737
        %1753 = vmatprep.subr.mxu0 0.0
        %1754 = vmatpush1.msra.mxu0 %v1738
        %1755 = vmatprep.subr.mxu0 0.0
        %1756 = vmatpush1.msra.mxu0 %v1739
        %1757 = vmatprep.subr.mxu0 0.0
        %1758 = vmatpush1.msra.mxu0 %v1740
        %1759 = vmatprep.subr.mxu0 0.0
        %1760 = vmatpush1.msra.mxu0 %v1741
        %1761 = vmatprep.subr.mxu0 0.0
        %1762 = vmatpush1.msra.mxu0 0.0
        %1763 = vmatprep.subr.mxu0 0.0
        %1764 = vmatpush1.msra.mxu0 0.0
        %1765 = vmatprep.subr.mxu0 0.0
        %1766 = vmatpush1.msra.mxu0 0.0
        %1767 = vmatprep.subr.mxu0 0.0
        %1768 = vmatpush1.msra.mxu0 0.0
        %1769 = vmatprep.subr.mxu0 0.0
        %1770 = vmatpush1.msra.mxu0 0.0
        %1771 = vmatprep.subr.mxu0 0.0
        %1772 = vmatpush1.msra.mxu0 0.0
        %1773 = vmatprep.subr.mxu0 0.0
        %1774 = vmatpush1.msra.mxu0 0.0
        %1775 = vmatprep.subr.mxu0 0.0
        %1776 = vmatpush1.msra.mxu0 0.0
        %1777 = vmatprep.subr.mxu0 0.0
        %1778 = vmatpush1.msra.mxu0 0.0
        %1779 = vmatprep.subr.mxu0 0.0
        %1780 = vmatpush1.msra.mxu0 0.0
        %1781 = vmatprep.subr.mxu0 0.0
        %1782 = vmatpush1.msra.mxu0 0.0
        %1783 = vmatprep.subr.mxu0 0.0
        %1784 = vmatpush1.msra.mxu0 0.0
        %1785 = vmatprep.subr.mxu0 0.0
        %1786 = vmatpush1.msra.mxu0 0.0
        %1787 = vmatprep.subr.mxu0 0.0
        %1788 = vmatpush1.msra.mxu0 0.0
        %1789 = vmatprep.subr.mxu0 0.0
        %1790 = vmatpush1.msra.mxu0 0.0
        %1791 = vmatprep.subr.mxu0 0.0
        %1792 = vmatpush1.msra.mxu0 0.0
        %1793 = vmatprep.subr.mxu0 0.0
        %1794 = vmatpush1.msra.mxu0 0.0
        %1795 = vmatprep.subr.mxu0 0.0
        %1796 = vmatpush1.msra.mxu0 0.0
        %1797 = vmatprep.subr.mxu0 0.0
        %1798 = vmatpush1.msra.mxu0 0.0
        %1799 = vmatprep.subr.mxu0 0.0
        %1800 = vmatpush1.msra.mxu0 0.0
        %1801 = vmatprep.subr.mxu0 0.0
        %1802 = vmatpush1.msra.mxu0 0.0
        %1803 = vmatprep.subr.mxu0 0.0
        %1804 = vmatpush1.msra.mxu0 0.0
        %1805 = vmatprep.subr.mxu0 0.0
        %1806 = vmatpush1.msra.mxu0 0.0
        %1807 = vmatprep.subr.mxu0 0.0
        %1808 = vmatpush1.msra.mxu0 0.0
        %1809 = vmatprep.mubr.f32.mxu0 0.0
        %1810 = vmatmul.mubr.f32.gmra.mrb[0].mxu0 %v1743
        %v1811 = vpop.f32.mrb[0].mxu0
        %v1812 = vadd.f32 0.0, %v1811
        %v1813 = vpop.f32.mrb[0].mxu0
        %1814 = vdwg.mxu0
        %v1815 = vadd.f32 %v1653, %v1812
        %v1816 = vld [vmem:[%s11] sm:$0xff]
        %v1818 = vsel %vm1257, %v1816, 0
        %1820 = vmatprep.subr.mxu0 0.0
        %1821 = vmatpush1.msra.mxu0 %v1815
        %1822 = vmatprep.subr.mxu0 0.0
        %1823 = vmatpush1.msra.mxu0 0.0
        %1824 = vmatprep.subr.mxu0 0.0
        %1825 = vmatpush1.msra.mxu0 0.0
        %1826 = vmatprep.subr.mxu0 0.0
        %1827 = vmatpush1.msra.mxu0 0.0
        %1828 = vmatprep.subr.mxu0 0.0
        %1829 = vmatpush1.msra.mxu0 0.0
        %1830 = vmatprep.subr.mxu0 0.0
        %1831 = vmatpush1.msra.mxu0 0.0
        %1832 = vmatprep.subr.mxu0 0.0
        %1833 = vmatpush1.msra.mxu0 0.0
        %1834 = vmatprep.subr.mxu0 0.0
        %1835 = vmatpush1.msra.mxu0 0.0
        %1836 = vmatprep.subr.mxu0 0.0
        %1837 = vmatpush1.msra.mxu0 0.0
        %1838 = vmatprep.subr.mxu0 0.0
        %1839 = vmatpush1.msra.mxu0 0.0
        %1840 = vmatprep.subr.mxu0 0.0
        %1841 = vmatpush1.msra.mxu0 0.0
        %1842 = vmatprep.subr.mxu0 0.0
        %1843 = vmatpush1.msra.mxu0 0.0
        %1844 = vmatprep.subr.mxu0 0.0
        %1845 = vmatpush1.msra.mxu0 0.0
        %1846 = vmatprep.subr.mxu0 0.0
        %1847 = vmatpush1.msra.mxu0 0.0
        %1848 = vmatprep.subr.mxu0 0.0
        %1849 = vmatpush1.msra.mxu0 0.0
        %1850 = vmatprep.subr.mxu0 0.0
        %1851 = vmatpush1.msra.mxu0 0.0
        %1852 = vmatprep.subr.mxu0 0.0
        %1853 = vmatpush1.msra.mxu0 0.0
        %1854 = vmatprep.subr.mxu0 0.0
        %1855 = vmatpush1.msra.mxu0 0.0
        %1856 = vmatprep.subr.mxu0 0.0
        %1857 = vmatpush1.msra.mxu0 0.0
        %1858 = vmatprep.subr.mxu0 0.0
        %1859 = vmatpush1.msra.mxu0 0.0
        %1860 = vmatprep.subr.mxu0 0.0
        %1861 = vmatpush1.msra.mxu0 0.0
        %1862 = vmatprep.subr.mxu0 0.0
        %1863 = vmatpush1.msra.mxu0 0.0
        %1864 = vmatprep.subr.mxu0 0.0
        %1865 = vmatpush1.msra.mxu0 0.0
        %1866 = vmatprep.subr.mxu0 0.0
        %1867 = vmatpush1.msra.mxu0 0.0
        %1868 = vmatprep.subr.mxu0 0.0
        %1869 = vmatpush1.msra.mxu0 0.0
        %1870 = vmatprep.subr.mxu0 0.0
        %1871 = vmatpush1.msra.mxu0 0.0
        %1872 = vmatprep.subr.mxu0 0.0
        %1873 = vmatpush1.msra.mxu0 0.0
        %1874 = vmatprep.subr.mxu0 0.0
        %1875 = vmatpush1.msra.mxu0 0.0
        %1876 = vmatprep.subr.mxu0 0.0
        %1877 = vmatpush1.msra.mxu0 0.0
        %1878 = vmatprep.subr.mxu0 0.0
        %1879 = vmatpush1.msra.mxu0 0.0
        %1880 = vmatprep.subr.mxu0 0.0
        %1881 = vmatpush1.msra.mxu0 0.0
        %1882 = vmatprep.subr.mxu0 0.0
        %1883 = vmatpush1.msra.mxu0 0.0
        %1884 = vmatprep.mubr.f32.mxu0 0.0
        %1885 = vmatmul.mubr.f32.gmra.mrb[0].mxu0 %v1818
        %v1886 = vpop.f32.mrb[0].mxu0
        %v1887 = vadd.f32 0.0, %v1886
        %v1888 = vpop.f32.mrb[0].mxu0
        %1889 = vdwg.mxu0
        %v1890 = vsub.f32 %v1815, %v1887
        %v1891 = vsel %vm1098, %v1890, 0.0
        %1892 = vadd.xlane.f32.xlu0 %v1891
        %v1893 = vpop.xlane.xlu0 %1892
        %v1894 = vrcp.pop 32.0
        %v1895 = vmul.f32 %v1893, %v1894
        %v1896 = vsub.f32 %v1890, %v1895
        %v1897 = vmul.f32 %v1896, %v1896
        %v1898 = vsel %vm1098, %v1897, 0.0
        %1899 = vadd.xlane.f32.xlu0 %v1898
        %v1900 = vpop.xlane.xlu0 %1899
        %v1901 = vmul.f32 %v1900, %v1894
        %v1902 = vadd.f32 %v1901, 1e-05
        %v1903 = vrsqrt.pop %v1902
        %v1904 = vmul.f32 %v1896, %v1903
        %v1905 = vld [vmem:[%s12] sm:$0x1]
        %v1907 = vlaneseq
        %v1908 = vshrl.u32 %v1907, 7
        %v1909 = vsub.s32 0, %v1908
        %v1910 = vrot.slane %v1905, %v1909
        %v1912 = vmul.f32 %v1904, %v1910
        %v1913 = vld [vmem:[%s13] sm:$0x1]
        %v1915 = vlaneseq
        %v1916 = vshrl.u32 %v1915, 7
        %v1917 = vsub.s32 0, %v1916
        %v1918 = vrot.slane %v1913, %v1917
        %v1920 = vadd.f32 %v1912, %v1918
        %v1921 = vsel %vm1098, %v1920, 0.0
        %v1922 = vrot.slane %v1921, 4
        %v1923 = vadd.f32 %v1921, %v1922
        %v1924 = vrot.slane %v1923, 2
        %v1925 = vadd.f32 %v1923, %v1924
        %v1926 = vrot.slane %v1925, 1
        %v1927 = vadd.f32 %v1925, %v1926
        %v1928 = vrcp.pop 8.0
        %v1929 = vmul.f32 %v1927, %v1928
        %v1930 = vsub.f32 %v1920, %v1929
        %v1931 = vld [vmem:[%s635] sm:$0xff]
        %v1932 = vld [vmem:[%s14] sm:$0xff]
        %v1933 = vld [vmem:[%s14 + $0x8] sm:$0xff]
        %v1934 = vld [vmem:[%s14 + $0x10] sm:$0xff]
        %v1935 = vld [vmem:[%s14 + $0x18] sm:$0xff]
        %v1936 = vld [vmem:[%s15] sm:$0xff]
        %v1937 = vld [vmem:[%s15 + $0x8] sm:$0xff]
        %v1938 = vld [vmem:[%s15 + $0x10] sm:$0xff]
        %v1940 = vrot.slane %v1931, 7
        %vm1941 = vcmask 195584
        %v1942 = vsel %vm1941, %v1940, 0
        %1944 = vmatprep.subr.mxu0 0.0
        %1945 = vmatpush1.msra.mxu0 %v1936
        %1946 = vmatprep.subr.mxu0 0.0
        %1947 = vmatpush1.msra.mxu0 %v1937
        %1948 = vmatprep.subr.mxu0 0.0
        %1949 = vmatpush1.msra.mxu0 %v1938
        %1950 = vmatprep.subr.mxu0 0.0
        %1951 = vmatpush1.msra.mxu0 0.0
        %1952 = vmatprep.subr.mxu0 0.0
        %1953 = vmatpush1.msra.mxu0 0.0
        %1954 = vmatprep.subr.mxu0 0.0
        %1955 = vmatpush1.msra.mxu0 0.0
        %1956 = vmatprep.subr.mxu0 0.0
        %1957 = vmatpush1.msra.mxu0 0.0
        %1958 = vmatprep.subr.mxu0 0.0
        %1959 = vmatpush1.msra.mxu0 0.0
        %1960 = vmatprep.subr.mxu0 0.0
        %1961 = vmatpush1.msra.mxu0 0.0
        %1962 = vmatprep.subr.mxu0 0.0
        %1963 = vmatpush1.msra.mxu0 0.0
        %1964 = vmatprep.subr.mxu0 0.0
        %1965 = vmatpush1.msra.mxu0 0.0
        %1966 = vmatprep.subr.mxu0 0.0
        %1967 = vmatpush1.msra.mxu0 0.0
        %1968 = vmatprep.subr.mxu0 0.0
        %1969 = vmatpush1.msra.mxu0 0.0
        %1970 = vmatprep.subr.mxu0 0.0
        %1971 = vmatpush1.msra.mxu0 0.0
        %1972 = vmatprep.subr.mxu0 0.0
        %1973 = vmatpush1.msra.mxu0 0.0
        %1974 = vmatprep.subr.mxu0 0.0
        %1975 = vmatpush1.msra.mxu0 0.0
        %1976 = vmatprep.subr.mxu0 0.0
        %1977 = vmatpush1.msra.mxu0 0.0
        %1978 = vmatprep.subr.mxu0 0.0
        %1979 = vmatpush1.msra.mxu0 0.0
        %1980 = vmatprep.subr.mxu0 0.0
        %1981 = vmatpush1.msra.mxu0 0.0
        %1982 = vmatprep.subr.mxu0 0.0
        %1983 = vmatpush1.msra.mxu0 0.0
        %1984 = vmatprep.subr.mxu0 0.0
        %1985 = vmatpush1.msra.mxu0 0.0
        %1986 = vmatprep.subr.mxu0 0.0
        %1987 = vmatpush1.msra.mxu0 0.0
        %1988 = vmatprep.subr.mxu0 0.0
        %1989 = vmatpush1.msra.mxu0 0.0
        %1990 = vmatprep.subr.mxu0 0.0
        %1991 = vmatpush1.msra.mxu0 0.0
        %1992 = vmatprep.subr.mxu0 0.0
        %1993 = vmatpush1.msra.mxu0 0.0
        %1994 = vmatprep.subr.mxu0 0.0
        %1995 = vmatpush1.msra.mxu0 0.0
        %1996 = vmatprep.subr.mxu0 0.0
        %1997 = vmatpush1.msra.mxu0 0.0
        %1998 = vmatprep.subr.mxu0 0.0
        %1999 = vmatpush1.msra.mxu0 0.0
        %2000 = vmatprep.subr.mxu0 0.0
        %2001 = vmatpush1.msra.mxu0 0.0
        %2002 = vmatprep.subr.mxu0 0.0
        %2003 = vmatpush1.msra.mxu0 0.0
        %2004 = vmatprep.subr.mxu0 0.0
        %2005 = vmatpush1.msra.mxu0 0.0
        %2006 = vmatprep.subr.mxu0 0.0
        %2007 = vmatpush1.msra.mxu0 0.0
        %2008 = vmatprep.mubr.f32.mxu0 0.0
        %2009 = vmatmul.mubr.f32.gmra.mrb[0].mxu0 %v1942
        %v2010 = vpop.f32.mrb[0].mxu0
        %v2011 = vadd.f32 0.0, %v2010
        %v2012 = vpop.f32.mrb[0].mxu0
        %2013 = vdwg.mxu0
        %v2015 = vrot.slane %v1930, 7
        %v2016 = vsel %vm1098, %v2015, 0
        %2018 = vmatprep.subr.mxu0 0.0
        %2019 = vmatpush1.msra.mxu0 %v1932
        %2020 = vmatprep.subr.mxu0 0.0
        %2021 = vmatpush1.msra.mxu0 %v1933
        %2022 = vmatprep.subr.mxu0 0.0
        %2023 = vmatpush1.msra.mxu0 %v1934
        %2024 = vmatprep.subr.mxu0 0.0
        %2025 = vmatpush1.msra.mxu0 %v1935
        %2026 = vmatprep.subr.mxu0 0.0
        %2027 = vmatpush1.msra.mxu0 0.0
        %2028 = vmatprep.subr.mxu0 0.0
        %2029 = vmatpush1.msra.mxu0 0.0
        %2030 = vmatprep.subr.mxu0 0.0
        %2031 = vmatpush1.msra.mxu0 0.0
        %2032 = vmatprep.subr.mxu0 0.0
        %2033 = vmatpush1.msra.mxu0 0.0
        %2034 = vmatprep.subr.mxu0 0.0
        %2035 = vmatpush1.msra.mxu0 0.0
        %2036 = vmatprep.subr.mxu0 0.0
        %2037 = vmatpush1.msra.mxu0 0.0
        %2038 = vmatprep.subr.mxu0 0.0
        %2039 = vmatpush1.msra.mxu0 0.0
        %2040 = vmatprep.subr.mxu0 0.0
        %2041 = vmatpush1.msra.mxu0 0.0
        %2042 = vmatprep.subr.mxu0 0.0
        %2043 = vmatpush1.msra.mxu0 0.0
        %2044 = vmatprep.subr.mxu0 0.0
        %2045 = vmatpush1.msra.mxu0 0.0
        %2046 = vmatprep.subr.mxu0 0.0
        %2047 = vmatpush1.msra.mxu0 0.0
        %2048 = vmatprep.subr.mxu0 0.0
        %2049 = vmatpush1.msra.mxu0 0.0
        %2050 = vmatprep.subr.mxu0 0.0
        %2051 = vmatpush1.msra.mxu0 0.0
        %2052 = vmatprep.subr.mxu0 0.0
        %2053 = vmatpush1.msra.mxu0 0.0
        %2054 = vmatprep.subr.mxu0 0.0
        %2055 = vmatpush1.msra.mxu0 0.0
        %2056 = vmatprep.subr.mxu0 0.0
        %2057 = vmatpush1.msra.mxu0 0.0
        %2058 = vmatprep.subr.mxu0 0.0
        %2059 = vmatpush1.msra.mxu0 0.0
        %2060 = vmatprep.subr.mxu0 0.0
        %2061 = vmatpush1.msra.mxu0 0.0
        %2062 = vmatprep.subr.mxu0 0.0
        %2063 = vmatpush1.msra.mxu0 0.0
        %2064 = vmatprep.subr.mxu0 0.0
        %2065 = vmatpush1.msra.mxu0 0.0
        %2066 = vmatprep.subr.mxu0 0.0
        %2067 = vmatpush1.msra.mxu0 0.0
        %2068 = vmatprep.subr.mxu0 0.0
        %2069 = vmatpush1.msra.mxu0 0.0
        %2070 = vmatprep.subr.mxu0 0.0
        %2071 = vmatpush1.msra.mxu0 0.0
        %2072 = vmatprep.subr.mxu0 0.0
        %2073 = vmatpush1.msra.mxu0 0.0
        %2074 = vmatprep.subr.mxu0 0.0
        %2075 = vmatpush1.msra.mxu0 0.0
        %2076 = vmatprep.subr.mxu0 0.0
        %2077 = vmatpush1.msra.mxu0 0.0
        %2078 = vmatprep.subr.mxu0 0.0
        %2079 = vmatpush1.msra.mxu0 0.0
        %2080 = vmatprep.subr.mxu0 0.0
        %2081 = vmatpush1.msra.mxu0 0.0
        %2082 = vmatprep.mubr.f32.mxu0 0.0
        %2083 = vmatmul.mubr.f32.gmra.mrb[0].mxu0 %v2016
        %v2084 = vpop.f32.mrb[0].mxu0
        %v2085 = vadd.f32 %v2011, %v2084
        %v2086 = vpop.f32.mrb[0].mxu0
        %2087 = vdwg.mxu0
        %v2088 = vld [vmem:[%s16] sm:$0x1]
        %v2089 = vadd.f32 %v2085, %v2088
        %vm2090 = vcmask 401408
        %2091 = vst.msk [vmem:[%s618] sm:$0x1] %vm2090, %v2089
        %v2092 = vsel %vm2090, %v2089, -inf
        %2093 = vmax.xlane.f32.xlu0 %v2092
        %v2094 = vpop.xlane.xlu0 %2093
        %v2095 = vsub.f32 %v2089, %v2094
        %v2096 = vmul.f32 %v2095, 1.442695
        %v2097 = vpow.pop %v2096
        %v2098 = vsel %vm2090, %v2097, 0.0
        %2099 = vadd.xlane.f32.xlu0 %v2098
        %v2100 = vpop.xlane.xlu0 %2099
        %v2101 = vlog2.pop %v2100
        %v2102 = vmul.f32 %v2101, 0.6931472
        %v2103 = vadd.f32 %v2102, %v2094
        %v2104 = vld [vmem:[%s638] sm:$0x1]
        %2105 = vset.pattern.permute.xlu0 0
        %2106 = vperm.xlu0 %2105, %v2104
        %v2107 = vpop.permute.xlu0 %2106
        %v2108 = vlaneseq
        %v2109 = vshrl.u32 %v2108, 7
        %v2110 = vsub.s32 0, %v2109
        %v2111 = vrot.slane %v2107, %v2110
        %vm2112 = vcmp.eq.s32.totalorder %v644, %v2111
        %v2113 = vsel %vm2112, %v2089, 0.0
        %v2114 = vsel %vm2090, %v2113, 0.0
        %2115 = vadd.xlane.f32.xlu0 %v2114
        %v2116 = vpop.xlane.xlu0 %2115
        %v2117 = vsub.f32 %v2103, %v2116
        %vm2118 = vcmask 0
        %2119 = vst.msk [vmem:[%s641] sm:$0x1] %vm2118, %v2117
        %s2120 = sand.u32 %s419, 1
        %s2121 = scalar_lea.sflag [#allocation6], %s2120
        %s2122 = sand.u32 %s419, 1
        %s2123 = scalar_lea.vmem [#allocation7], %s2122
        %p2124 = scmp.lt.s32.totalorder %s34, 1
        %s2125 = scalar_select %p2124, %s34, 1
        %s2126 = scalar_lea.vmem %s18, %s2125
        // Predicated region
        $region93: #{tpu_custom_call.1} parent=87 // pred_check
          %p2127 = pneg %p429
        $region94: #{tpu_custom_call.1} parent=87 // pred_check_branch
          %2129 = sbr.rel (%p2127) target = $region96
        $region95: #{tpu_custom_call.1} parent=87 // pred_region
          %s2131 = ssub.s32 16, 16
          %2132 = vsyncadd %s2121, %s2131
          %s2133 = smul.addr %s34, 16
          %s2134 = scalar_lea.hbm %s17, %s2133
          %s2136 = sshll.u32 %s2123, 4
          %s2137 = int_to_ptr.vmem [resolvable:$true] %s2136
          %2139 = dma.vmem_to_hbm [thread:$0]  %s2137, 16, %s2134, %s2121
        $region96: #{tpu_custom_call.1} parent=87 // pred_fallthru
          _
        // Predicated region
        $region97: #{tpu_custom_call.1} parent=87 // pred_check
          %p2140 = pneg %p455
        $region98: #{tpu_custom_call.1} parent=87 // pred_check_branch
          %2142 = sbr.rel (%p2140) target = $region100
        $region99: #{tpu_custom_call.1} parent=87 // pred_region
          _
        $region100: #{tpu_custom_call.1} parent=87 // pred_fallthru
          _
      $region88: #{tpu_custom_call.1} parent=5 // pred_fallthru
        _
      %p2143 = scmp.le.s32.totalorder 2, %s29
      // Predicated region
      $region101: #{tpu_custom_call.1} parent=5 // pred_check
        %p2144 = pneg %p2143
      $region102: #{tpu_custom_call.1} parent=5 // pred_check_branch
        %2146 = sbr.rel (%p2144) target = $region104
      $region103: #{tpu_custom_call.1} parent=5 // pred_region
        %s2147 = ssub.s32 %s29, 2
        // Predicated region
        $region105: #{tpu_custom_call.1} parent=103 // pred_check
          %p2148 = pneg %p435
        $region106: #{tpu_custom_call.1} parent=103 // pred_check_branch
          %2150 = sbr.rel (%p2148) target = $region108
        $region107: #{tpu_custom_call.1} parent=103 // pred_region
          %s2151 = sand.u32 %s420, 1
          %s2152 = scalar_lea.sflag [#allocation6], %s2151
          %s2153 = sand.u32 %s420, 1
          %s2154 = scalar_lea.vmem [#allocation7], %s2153
          %2155 = dma.done %s2152, 16
        $region108: #{tpu_custom_call.1} parent=103 // pred_fallthru
          _
        // Predicated region
        $region109: #{tpu_custom_call.1} parent=103 // pred_check
          %p2156 = pneg %p461
        $region110: #{tpu_custom_call.1} parent=103 // pred_check_branch
          %2158 = sbr.rel (%p2156) target = $region112
        $region111: #{tpu_custom_call.1} parent=103 // pred_region
          %p2159 = scmp.lt.s32.totalorder %s35, 1
          %s2160 = scalar_select %p2159, %s35, 1
          %s2161 = scalar_lea.vmem %s18, %s2160
        $region112: #{tpu_custom_call.1} parent=103 // pred_fallthru
          _
      $region104: #{tpu_custom_call.1} parent=5 // pred_fallthru
        _
    $region6: #{tpu_custom_call.1} parent=1 // loop_footer
      %s33 = sadd.s32 1, %s29
    $region7: #{tpu_custom_call.1} parent=1 // loop_footer_branch
      %28 = sbr.rel target = $region3
    $region8: #{tpu_custom_call.1} parent=1 // loop_exit
      _
    %2162 = vsyncpa [#allocation5], 1
    %s2163 = scalar_lea.sflag [#allocation5], 1
    %2164 = vsyncpa %s2163, 1
    %2165 = vsyncpa [#allocation6], 1
    %s2166 = scalar_lea.sflag [#allocation6], 1
    %2167 = vsyncpa %s2166, 1

</llo_original>
